<compile_context>
chip_gen: v6e
topology: v6e:2x2x1
jax: 0.10.0
libtpu: 0.0.40
codegen_flags: <defaults>
</compile_context>

<pallas_src>
import functools

import jax
import jax.numpy as jnp
from jax.experimental import pallas as pl
from jax.experimental.pallas import tpu as pltpu


_SQRT1_2 = 0.7071067811865476


def _erf_approx(z):
    # Abramowitz & Stegun 7.1.26 (max abs error ~1.5e-7).  Uses only ops with
    # guaranteed Mosaic lowerings (abs / exp / mul / add / where), so the exact
    # (erf-based) torch.nn.GELU semantics are preserved without relying on an
    # erf lowering.
    a1, a2, a3, a4, a5 = (0.254829592, -0.284496736, 1.421413741,
                          -1.453152027, 1.061405429)
    p = 0.3275911
    az = jnp.abs(z)
    t = 1.0 / (1.0 + p * az)
    poly = ((((a5 * t + a4) * t + a3) * t + a2) * t + a1) * t
    y = 1.0 - poly * jnp.exp(-az * az)
    return jnp.where(z < 0.0, -y, y)


def _gelu_exact(x):
    # Matches torch.nn.GELU() (erf form) to ~1e-7.
    return 0.5 * x * (1.0 + _erf_approx(x * _SQRT1_2))


def _resize_bilinear_align_corners(x, out_hw):
    """(B, C, H, W) -> (B, C, oh, ow), bilinear, align_corners=True (pure JAX)."""
    _, _, H, W = x.shape
    oh, ow = out_hw
    if (H, W) == (oh, ow):
        return x
    ys = jnp.linspace(0.0, H - 1.0, oh)
    xs = jnp.linspace(0.0, W - 1.0, ow)
    y0 = jnp.floor(ys).astype(jnp.int32)
    x0 = jnp.floor(xs).astype(jnp.int32)
    y1 = jnp.minimum(y0 + 1, H - 1)
    x1 = jnp.minimum(x0 + 1, W - 1)
    wy = (ys - y0.astype(ys.dtype))[:, None]
    wx = (xs - x0.astype(xs.dtype))[None, :]
    g = lambda yy, xx: x[:, :, yy, :][:, :, :, xx]
    top = g(y0, x0) * (1.0 - wx) + g(y0, x1) * wx
    bot = g(y1, x0) * (1.0 - wx) + g(y1, x1) * wx
    return top * (1.0 - wy) + bot * wy


def _linear_splitter_kernel(x_ref, bp_ref, w1t_ref, b1_ref, w2t_ref, b2_ref,
                            g_ref, gt_ref, m_ref, b_out_ref, c_out_ref,
                            *, min_depth, eps, mlp_chunk):
    # x_ref : (1, Cin, T)          pixels-in-lanes tile (T = tile_hw, lane dim)
    # bp_ref: (1, prev_nbins, T)   b_prev tile (un-normalized)
    # w1t   : (mlp_dim, Cin)   b1: (mlp_dim, 1)
    # w2t   : (n_out, mlp_dim) b2: (n_out, 1)
    # g     : (prev_nbins, n_out)  group-sum matrix (0/1)
    # gt    : (n_out, prev_nbins)  group-expand matrix (= g.T)
    # m     : (n_out, n_out)       (max-min) * (tril(1) - 0.5*I)  (cumsum+centers)
    # b_out / c_out: (1, n_out, T) lane-dense outputs
    x = x_ref[0].astype(jnp.float32)        # (Cin, T)
    bp = bp_ref[0].astype(jnp.float32)      # (prev_nbins, T)

    mlp_dim = w1t_ref.shape[0]

    # conv1x1 -> GELU -> conv1x1, chunked over the hidden dim so the live
    # intermediate never exceeds (mlp_chunk, T).  No zero-init accumulator
    # (first chunk writes directly; avoids a broadcast+add).
    acc = None
    for c0 in range(0, mlp_dim, mlp_chunk):
        w1c = w1t_ref[c0:c0 + mlp_chunk, :]
        b1c = b1_ref[c0:c0 + mlp_chunk, :]
        h = _gelu_exact(
            jnp.dot(w1c, x, preferred_element_type=jnp.float32) + b1c)
        w2c = w2t_ref[:, c0:c0 + mlp_chunk]
        part = jnp.dot(w2c, h, preferred_element_type=jnp.float32)
        acc = part if acc is None else acc + part

    s = jnp.maximum(acc + b2_ref[...], 0.0) + eps             # (n_out, T)

    # b_prev normalized over bins; S normalized within each split_factor
    # group; combined:  b[c] = s[c] * bp[g(c)] / (sum_bins(bp) * gsum[g(c)])
    # (both normalizations fused into a single divide).
    bp_sum = jnp.sum(bp, axis=0, keepdims=True)               # (1, T)
    gsum = jnp.dot(g_ref[...], s, preferred_element_type=jnp.float32)
    ratio = bp / (bp_sum * gsum)                              # (prev_nbins, T)
    b = s * jnp.dot(gt_ref[...], ratio, preferred_element_type=jnp.float32)

    # centers_k = min_depth + cumsum(widths)_k - 0.5*widths_k with
    # widths = (max-min)*b; both terms folded into the constant matrix m.
    centers = min_depth + jnp.dot(m_ref[...], b,
                                  preferred_element_type=jnp.float32)

    b_out_ref[0] = b.astype(b_out_ref.dtype)
    c_out_ref[0] = centers.astype(c_out_ref.dtype)


def linear_splitter_forward(x, b_prev, w1, b1, w2, b2, *, prev_nbins,
                            split_factor=2, min_depth=0.001, max_depth=10.0,
                            prev_b_embedding=None, interpolate=True,
                            tile_hw=2048):
    """x: (B, in_features, H, W); b_prev: (B, prev_nbins, Hp, Wp).
    w1: (in_features, mlp_dim), b1: (mlp_dim,), w2: (mlp_dim, n_out), b2: (n_out,).
    Returns (b, B_centers), both (B, prev_nbins*split_factor, H, W)."""
    if prev_b_embedding is not None:
        if interpolate:
            prev_b_embedding = _resize_bilinear_align_corners(
                prev_b_embedding, x.shape[-2:])
        x = x + prev_b_embedding

    B, Cin, H, W = x.shape
    HW = H * W
    mlp_dim = w1.shape[1]
    n_out = w2.shape[1]
    assert n_out == prev_nbins * split_factor

    b_prev = _resize_bilinear_align_corners(b_prev, (H, W))

    # Free reshapes (no transpose, no extra HBM traffic): NCHW -> (B, C, H*W).
    x3 = x.reshape(B, Cin, HW).astype(jnp.float32)
    bp3 = b_prev.reshape(B, prev_nbins, HW).astype(jnp.float32)

    # Pick a lane-dense (128-aligned) pixel tile and pad H*W up to a multiple
    # of it, so arbitrary spatial sizes work with unmasked full-lane stores.
    hw_128 = ((HW + 127) // 128) * 128
    tile_hw = max(128, min((tile_hw // 128) * 128, hw_128))
    hw_pad = ((HW + tile_hw - 1) // tile_hw) * tile_hw
    if hw_pad != HW:
        x3 = jnp.pad(x3, ((0, 0), (0, 0), (0, hw_pad - HW)))
        # Pad b_prev with ones so padded lanes never divide by zero.
        bp3 = jnp.pad(bp3, ((0, 0), (0, 0), (0, hw_pad - HW)),
                      constant_values=1.0)

    mlp_chunk = 128 if (mlp_dim % 128 == 0) else mlp_dim

    # Transposed weights for pixels-in-lanes matmuls; biases as columns.
    w1t = jnp.asarray(w1, jnp.float32).T                      # (mlp_dim, Cin)
    w2t = jnp.asarray(w2, jnp.float32).T                      # (n_out, mlp_dim)
    b1c = jnp.asarray(b1, jnp.float32).reshape(mlp_dim, 1)
    b2c = jnp.asarray(b2, jnp.float32).reshape(n_out, 1)

    # Small constant matrices: group-sum, group-expand, fused cumsum/centers.
    grp = jnp.arange(n_out, dtype=jnp.int32) // split_factor
    g_mat = (grp[None, :] == jnp.arange(prev_nbins, dtype=jnp.int32)[:, None]
             ).astype(jnp.float32)                            # (prev_nbins, n_out)
    gt_mat = g_mat.T                                          # (n_out, prev_nbins)
    tri = jnp.tril(jnp.ones((n_out, n_out), jnp.float32))
    m_mat = (max_depth - min_depth) * (
        tri - 0.5 * jnp.eye(n_out, dtype=jnp.float32))        # (n_out, n_out)

    grid = (B, hw_pad // tile_hw)
    kernel = functools.partial(_linear_splitter_kernel, min_depth=min_depth,
                               eps=0.001, mlp_chunk=mlp_chunk)

    const_spec = lambda shape: pl.BlockSpec(shape, lambda bi, ti: (0, 0))

    b_flat, centers_flat = pl.pallas_call(
        kernel,
        out_shape=(
            jax.ShapeDtypeStruct((B, n_out, hw_pad), jnp.float32),
            jax.ShapeDtypeStruct((B, n_out, hw_pad), jnp.float32),
        ),
        grid_spec=pltpu.PrefetchScalarGridSpec(
            num_scalar_prefetch=0,
            grid=grid,
            in_specs=[
                pl.BlockSpec((1, Cin, tile_hw), lambda bi, ti: (bi, 0, ti)),
                pl.BlockSpec((1, prev_nbins, tile_hw), lambda bi, ti: (bi, 0, ti)),
                const_spec((mlp_dim, Cin)),
                const_spec((mlp_dim, 1)),
                const_spec((n_out, mlp_dim)),
                const_spec((n_out, 1)),
                const_spec((prev_nbins, n_out)),
                const_spec((n_out, prev_nbins)),
                const_spec((n_out, n_out)),
            ],
            out_specs=[
                pl.BlockSpec((1, n_out, tile_hw), lambda bi, ti: (bi, 0, ti)),
                pl.BlockSpec((1, n_out, tile_hw), lambda bi, ti: (bi, 0, ti)),
            ],
        ),
        compiler_params=pltpu.CompilerParams(
            dimension_semantics=("parallel", "parallel")),
    )(x3, bp3, w1t, b1c, w2t, b2c, g_mat, gt_mat, m_mat)

    if hw_pad != HW:
        b_flat = b_flat[:, :, :HW]
        centers_flat = centers_flat[:, :, :HW]

    # Free reshapes back to NCHW.
    return (b_flat.reshape(B, n_out, H, W),
            centers_flat.reshape(B, n_out, H, W))


def _reference_forward(x, b_prev, w1, b1, w2, b2, *, prev_nbins, split_factor,
                       min_depth, max_depth, prev_b_embedding=None):
    # Pure-JAX reference mirroring the PyTorch forward (for verification).
    if prev_b_embedding is not None:
        x = x + _resize_bilinear_align_corners(prev_b_embedding, x.shape[-2:])
    B, Cin, H, W = x.shape
    n_out = prev_nbins * split_factor
    xf = jnp.transpose(x, (0, 2, 3, 1)).reshape(-1, Cin)
    h = _gelu_exact(xf @ w1 + b1)
    s = jnp.maximum(h @ w2 + b2, 0.0) + 0.001
    sg = s.reshape(-1, prev_nbins, split_factor)
    s_normed = sg / jnp.sum(sg, axis=2, keepdims=True)
    bp = _resize_bilinear_align_corners(b_prev, (H, W))
    bp = bp / jnp.sum(bp, axis=1, keepdims=True)
    bpf = jnp.transpose(bp, (0, 2, 3, 1)).reshape(-1, prev_nbins)
    b = (bpf[:, :, None] * s_normed).reshape(-1, n_out)
    widths = (max_depth - min_depth) * b
    widths = jnp.concatenate(
        [jnp.full((widths.shape[0], 1), min_depth, widths.dtype), widths], axis=-1)
    edges = jnp.cumsum(widths, axis=-1)
    centers = 0.5 * (edges[:, :-1] + edges[:, 1:])
    to_nchw = lambda a: jnp.transpose(a.reshape(B, H, W, n_out), (0, 3, 1, 2))
    return to_nchw(b), to_nchw(centers)


def _run_case(key, B, Cin, H, W, Hp, Wp, prev_nbins, split_factor, mlp_dim,
              min_depth, max_depth):
    n_out = prev_nbins * split_factor
    kx, kb, ke, k1, k2, k3, k4 = jax.random.split(key, 7)

    x = jax.random.normal(kx, (B, Cin, H, W), dtype=jnp.float32)
    b_prev = jax.random.uniform(kb, (B, prev_nbins, Hp, Wp),
                                dtype=jnp.float32, minval=0.1, maxval=1.0)
    prev_b_embedding = 0.5 * jax.random.normal(
        ke, (B, Cin, Hp, Wp), dtype=jnp.float32)
    # Conv2d 1x1 weights (torch shape (out,in,1,1)) stored as (in, out) matrices.
    w1 = 0.1 * jax.random.normal(k1, (Cin, mlp_dim), dtype=jnp.float32)
    b1 = 0.05 * jax.random.normal(k2, (mlp_dim,), dtype=jnp.float32)
    w2 = 0.1 * jax.random.normal(k3, (mlp_dim, n_out), dtype=jnp.float32)
    b2 = 0.05 * jax.random.normal(k4, (n_out,), dtype=jnp.float32)

    b_out, centers = linear_splitter_forward(
        x, b_prev, w1, b1, w2, b2, prev_nbins=prev_nbins,
        split_factor=split_factor, min_depth=min_depth, max_depth=max_depth,
        prev_b_embedding=prev_b_embedding)
    jax.block_until_ready((b_out, centers))

    ref_b, ref_centers = _reference_forward(
        x, b_prev, w1, b1, w2, b2, prev_nbins=prev_nbins,
        split_factor=split_factor, min_depth=min_depth, max_depth=max_depth,
        prev_b_embedding=prev_b_embedding)

    assert b_out.shape == (B, n_out, H, W)
    assert centers.shape == (B, n_out, H, W)
    assert jnp.allclose(b_out, ref_b, atol=1e-5, rtol=1e-4)
    assert jnp.allclose(centers, ref_centers, atol=1e-4, rtol=1e-4)


if __name__ == "__main__":
    # Shapes consistent with the module: in_features=4, prev_nbins=8,
    # split_factor=2 (n_out=16), mlp_dim=128 (module default), batch=2,
    # spatial 16x16; b_prev / prev_b_embedding at 8x8 to exercise the
    # align_corners=True bilinear path.
    key = jax.random.PRNGKey(0)
    k_main, k_pad = jax.random.split(key)

    _run_case(k_main, B=2, Cin=4, H=16, W=16, Hp=8, Wp=8,
              prev_nbins=8, split_factor=2, mlp_dim=128,
              min_depth=0.001, max_depth=10.0)

    # Second case with H*W = 144 (not a multiple of 128) to exercise the
    # lane-padding path.
    _run_case(k_pad, B=2, Cin=4, H=12, W=12, Hp=6, Wp=6,
              prev_nbins=8, split_factor=2, mlp_dim=128,
              min_depth=0.001, max_depth=10.0)

    print("KERNEL_OK")
</pallas_src>

<mosaic_0001>
module attributes {stable_mosaic.version = 11 : i64} {
  func.func @_linear_splitter_kernel(%arg0: i32, %arg1: i32, %arg2: memref<1x4x256xf32, #tpu.memory_space<vmem>>, %arg3: memref<1x8x256xf32, #tpu.memory_space<vmem>>, %arg4: memref<128x4xf32, #tpu.memory_space<vmem>>, %arg5: memref<128x1xf32, #tpu.memory_space<vmem>>, %arg6: memref<16x128xf32, #tpu.memory_space<vmem>>, %arg7: memref<16x1xf32, #tpu.memory_space<vmem>>, %arg8: memref<8x16xf32, #tpu.memory_space<vmem>>, %arg9: memref<16x8xf32, #tpu.memory_space<vmem>>, %arg10: memref<16x16xf32, #tpu.memory_space<vmem>>, %arg11: memref<1x16x256xf32, #tpu.memory_space<vmem>>, %arg12: memref<1x16x256xf32, #tpu.memory_space<vmem>>) attributes {dimension_semantics = [#tpu.dimension_semantics<parallel>, #tpu.dimension_semantics<parallel>], iteration_bounds = array<i64: 2, 1>, scalar_prefetch = 0 : i64, scratch_operands = 0 : i64, tpu.core_type = #tpu.core_type<tc>, window_params = [{transform_indices = @transform_0, window_bounds = array<i64: 1, 4, 256>}, {transform_indices = @transform_1, window_bounds = array<i64: 1, 8, 256>}, {pipeline_mode = #tpu.pipeline_mode<synchronous>, transform_indices = @transform_2, window_bounds = array<i64: 128, 4>}, {pipeline_mode = #tpu.pipeline_mode<synchronous>, transform_indices = @transform_3, window_bounds = array<i64: 128, 1>}, {pipeline_mode = #tpu.pipeline_mode<synchronous>, transform_indices = @transform_4, window_bounds = array<i64: 16, 128>}, {pipeline_mode = #tpu.pipeline_mode<synchronous>, transform_indices = @transform_5, window_bounds = array<i64: 16, 1>}, {pipeline_mode = #tpu.pipeline_mode<synchronous>, transform_indices = @transform_6, window_bounds = array<i64: 8, 16>}, {pipeline_mode = #tpu.pipeline_mode<synchronous>, transform_indices = @transform_7, window_bounds = array<i64: 16, 8>}, {pipeline_mode = #tpu.pipeline_mode<synchronous>, transform_indices = @transform_8, window_bounds = array<i64: 16, 16>}, {transform_indices = @transform_9, window_bounds = array<i64: 1, 16, 256>}, {transform_indices = @transform_10, window_bounds = array<i64: 1, 16, 256>}]} {
    %c0 = arith.constant 0 : index
    %c0_0 = arith.constant 0 : index
    %c0_1 = arith.constant 0 : index
    %0 = vector.load %arg2[%c0, %c0_0, %c0_1] : memref<1x4x256xf32, #tpu.memory_space<vmem>>, vector<1x4x256xf32>
    %1 = vector.shape_cast %0 : vector<1x4x256xf32> to vector<4x256xf32>
    %c0_2 = arith.constant 0 : index
    %c0_3 = arith.constant 0 : index
    %c0_4 = arith.constant 0 : index
    %2 = vector.load %arg3[%c0_2, %c0_3, %c0_4] : memref<1x8x256xf32, #tpu.memory_space<vmem>>, vector<1x8x256xf32>
    %3 = vector.shape_cast %2 : vector<1x8x256xf32> to vector<8x256xf32>
    %c0_5 = arith.constant 0 : index
    %c0_6 = arith.constant 0 : index
    %4 = vector.load %arg4[%c0_5, %c0_6] : memref<128x4xf32, #tpu.memory_space<vmem>>, vector<128x4xf32>
    %c0_7 = arith.constant 0 : index
    %c0_8 = arith.constant 0 : index
    %5 = vector.load %arg5[%c0_7, %c0_8] : memref<128x1xf32, #tpu.memory_space<vmem>>, vector<128x1xf32>
    %cst = arith.constant dense<0.000000e+00> : vector<128x256xf32>
    %6 = tpu.matmul %4, %1, %cst {dimension_numbers = #tpu.dot_dimension_numbers<[1], [0], [0], [1], [0, 0, 1, 1], [], []>} : vector<128x4xf32>, vector<4x256xf32>, vector<128x256xf32> -> vector<128x256xf32>
    %7 = vector.broadcast %5 : vector<128x1xf32> to vector<128x256xf32>
    %8 = arith.addf %6, %7 : vector<128x256xf32>
    %cst_9 = arith.constant 5.000000e-01 : f32
    %9 = vector.broadcast %cst_9 : f32 to vector<128x256xf32>
    %10 = arith.mulf %9, %8 : vector<128x256xf32>
    %cst_10 = arith.constant 0.707106769 : f32
    %11 = vector.broadcast %cst_10 : f32 to vector<128x256xf32>
    %12 = arith.mulf %8, %11 : vector<128x256xf32>
    %13 = math.absf %12 : vector<128x256xf32>
    %cst_11 = arith.constant 0.327591091 : f32
    %14 = vector.broadcast %cst_11 : f32 to vector<128x256xf32>
    %15 = arith.mulf %14, %13 : vector<128x256xf32>
    %cst_12 = arith.constant 1.000000e+00 : f32
    %16 = vector.broadcast %cst_12 : f32 to vector<128x256xf32>
    %17 = arith.addf %16, %15 : vector<128x256xf32>
    %cst_13 = arith.constant 1.000000e+00 : f32
    %18 = vector.broadcast %cst_13 : f32 to vector<128x256xf32>
    %19 = arith.divf %18, %17 : vector<128x256xf32>
    %cst_14 = arith.constant 1.06140542 : f32
    %20 = vector.broadcast %cst_14 : f32 to vector<128x256xf32>
    %21 = arith.mulf %20, %19 : vector<128x256xf32>
    %cst_15 = arith.constant -1.45315206 : f32
    %22 = vector.broadcast %cst_15 : f32 to vector<128x256xf32>
    %23 = arith.addf %21, %22 : vector<128x256xf32>
    %24 = arith.mulf %23, %19 : vector<128x256xf32>
    %cst_16 = arith.constant 1.42141378 : f32
    %25 = vector.broadcast %cst_16 : f32 to vector<128x256xf32>
    %26 = arith.addf %24, %25 : vector<128x256xf32>
    %27 = arith.mulf %26, %19 : vector<128x256xf32>
    %cst_17 = arith.constant -0.284496725 : f32
    %28 = vector.broadcast %cst_17 : f32 to vector<128x256xf32>
    %29 = arith.addf %27, %28 : vector<128x256xf32>
    %30 = arith.mulf %29, %19 : vector<128x256xf32>
    %cst_18 = arith.constant 0.254829586 : f32
    %31 = vector.broadcast %cst_18 : f32 to vector<128x256xf32>
    %32 = arith.addf %30, %31 : vector<128x256xf32>
    %33 = arith.mulf %32, %19 : vector<128x256xf32>
    %cst_19 = arith.constant 0.000000e+00 : f32
    %34 = vector.broadcast %cst_19 : f32 to vector<128x256xf32>
    %35 = arith.subf %34, %13 : vector<128x256xf32>
    %36 = arith.mulf %35, %13 : vector<128x256xf32>
    %37 = math.exp %36 : vector<128x256xf32>
    %38 = arith.mulf %33, %37 : vector<128x256xf32>
    %cst_20 = arith.constant 1.000000e+00 : f32
    %39 = vector.broadcast %cst_20 : f32 to vector<128x256xf32>
    %40 = arith.subf %39, %38 : vector<128x256xf32>
    %cst_21 = arith.constant 0.000000e+00 : f32
    %41 = vector.broadcast %cst_21 : f32 to vector<128x256xf32>
    %42 = arith.cmpf olt, %12, %41 : vector<128x256xf32>
    %cst_22 = arith.constant 0.000000e+00 : f32
    %43 = vector.broadcast %cst_22 : f32 to vector<128x256xf32>
    %44 = arith.subf %43, %40 : vector<128x256xf32>
    %45 = arith.select %42, %44, %40 : vector<128x256xi1>, vector<128x256xf32>
    %cst_23 = arith.constant 1.000000e+00 : f32
    %46 = vector.broadcast %cst_23 : f32 to vector<128x256xf32>
    %47 = arith.addf %46, %45 : vector<128x256xf32>
    %48 = arith.mulf %10, %47 : vector<128x256xf32>
    %c0_24 = arith.constant 0 : index
    %c0_25 = arith.constant 0 : index
    %49 = vector.load %arg6[%c0_24, %c0_25] : memref<16x128xf32, #tpu.memory_space<vmem>>, vector<16x128xf32>
    %cst_26 = arith.constant dense<0.000000e+00> : vector<16x256xf32>
    %50 = tpu.matmul %49, %48, %cst_26 {dimension_numbers = #tpu.dot_dimension_numbers<[1], [0], [0], [1], [0, 0, 1, 1], [], []>} : vector<16x128xf32>, vector<128x256xf32>, vector<16x256xf32> -> vector<16x256xf32>
    %c0_27 = arith.constant 0 : index
    %c0_28 = arith.constant 0 : index
    %51 = vector.load %arg7[%c0_27, %c0_28] : memref<16x1xf32, #tpu.memory_space<vmem>>, vector<16x1xf32>
    %52 = vector.broadcast %51 : vector<16x1xf32> to vector<16x256xf32>
    %53 = arith.addf %50, %52 : vector<16x256xf32>
    %cst_29 = arith.constant 0.000000e+00 : f32
    %54 = vector.broadcast %cst_29 : f32 to vector<16x256xf32>
    %55 = arith.maximumf %53, %54 : vector<16x256xf32>
    %cst_30 = arith.constant 1.000000e-03 : f32
    %56 = vector.broadcast %cst_30 : f32 to vector<16x256xf32>
    %57 = arith.addf %55, %56 : vector<16x256xf32>
    %cst_31 = arith.constant dense<0.000000e+00> : vector<256xf32>
    %58 = vector.multi_reduction <add>, %3, %cst_31 [0] : vector<8x256xf32> to vector<256xf32>
    %59 = vector.shape_cast %58 : vector<256xf32> to vector<1x256xf32>
    %c0_32 = arith.constant 0 : index
    %c0_33 = arith.constant 0 : index
    %60 = vector.load %arg8[%c0_32, %c0_33] : memref<8x16xf32, #tpu.memory_space<vmem>>, vector<8x16xf32>
    %cst_34 = arith.constant dense<0.000000e+00> : vector<8x256xf32>
    %61 = tpu.matmul %60, %57, %cst_34 {dimension_numbers = #tpu.dot_dimension_numbers<[1], [0], [0], [1], [0, 0, 1, 1], [], []>} : vector<8x16xf32>, vector<16x256xf32>, vector<8x256xf32> -> vector<8x256xf32>
    %62 = vector.broadcast %59 : vector<1x256xf32> to vector<8x256xf32>
    %63 = arith.mulf %62, %61 : vector<8x256xf32>
    %64 = arith.divf %3, %63 : vector<8x256xf32>
    %c0_35 = arith.constant 0 : index
    %c0_36 = arith.constant 0 : index
    %65 = vector.load %arg9[%c0_35, %c0_36] : memref<16x8xf32, #tpu.memory_space<vmem>>, vector<16x8xf32>
    %cst_37 = arith.constant dense<0.000000e+00> : vector<16x256xf32>
    %66 = tpu.matmul %65, %64, %cst_37 {dimension_numbers = #tpu.dot_dimension_numbers<[1], [0], [0], [1], [0, 0, 1, 1], [], []>} : vector<16x8xf32>, vector<8x256xf32>, vector<16x256xf32> -> vector<16x256xf32>
    %67 = arith.mulf %57, %66 : vector<16x256xf32>
    %c0_38 = arith.constant 0 : index
    %c0_39 = arith.constant 0 : index
    %68 = vector.load %arg10[%c0_38, %c0_39] : memref<16x16xf32, #tpu.memory_space<vmem>>, vector<16x16xf32>
    %cst_40 = arith.constant dense<0.000000e+00> : vector<16x256xf32>
    %69 = tpu.matmul %68, %67, %cst_40 {dimension_numbers = #tpu.dot_dimension_numbers<[1], [0], [0], [1], [0, 0, 1, 1], [], []>} : vector<16x16xf32>, vector<16x256xf32>, vector<16x256xf32> -> vector<16x256xf32>
    %cst_41 = arith.constant 1.000000e-03 : f32
    %70 = vector.broadcast %cst_41 : f32 to vector<16x256xf32>
    %71 = arith.addf %70, %69 : vector<16x256xf32>
    %c0_42 = arith.constant 0 : index
    %c0_43 = arith.constant 0 : index
    %c0_44 = arith.constant 0 : index
    %72 = vector.load %arg11[%c0_42, %c0_43, %c0_44] : memref<1x16x256xf32, #tpu.memory_space<vmem>>, vector<1x16x256xf32>
    %73 = vector.shape_cast %72 : vector<1x16x256xf32> to vector<16x256xf32>
    %74 = vector.shape_cast %67 : vector<16x256xf32> to vector<1x16x256xf32>
    tpu.vector_store %arg11[%c0_42, %c0_43, %c0_44], %74 {strides = array<i32>} : memref<1x16x256xf32, #tpu.memory_space<vmem>>, vector<1x16x256xf32>,
    %c0_45 = arith.constant 0 : index
    %c0_46 = arith.constant 0 : index
    %c0_47 = arith.constant 0 : index
    %75 = vector.load %arg12[%c0_45, %c0_46, %c0_47] : memref<1x16x256xf32, #tpu.memory_space<vmem>>, vector<1x16x256xf32>
    %76 = vector.shape_cast %75 : vector<1x16x256xf32> to vector<16x256xf32>
    %77 = vector.shape_cast %71 : vector<16x256xf32> to vector<1x16x256xf32>
    tpu.vector_store %arg12[%c0_45, %c0_46, %c0_47], %77 {strides = array<i32>} : memref<1x16x256xf32, #tpu.memory_space<vmem>>, vector<1x16x256xf32>,
    return
  }
  func.func @transform_0(%arg0: i32, %arg1: i32) -> (i32, i32, i32) {
    %c0_i32 = arith.constant 0 : i32
    %c0_i32_0 = arith.constant 0 : i32
    return %arg0, %c0_i32, %arg1 : i32, i32, i32
  }
  func.func @transform_1(%arg0: i32, %arg1: i32) -> (i32, i32, i32) {
    %c0_i32 = arith.constant 0 : i32
    %c0_i32_0 = arith.constant 0 : i32
    return %arg0, %c0_i32, %arg1 : i32, i32, i32
  }
  func.func @transform_2(%arg0: i32, %arg1: i32) -> (i32, i32) {
    %c0_i32 = arith.constant 0 : i32
    %c0_i32_0 = arith.constant 0 : i32
    %c0_i32_1 = arith.constant 0 : i32
    return %c0_i32, %c0_i32_0 : i32, i32
  }
  func.func @transform_3(%arg0: i32, %arg1: i32) -> (i32, i32) {
    %c0_i32 = arith.constant 0 : i32
    %c0_i32_0 = arith.constant 0 : i32
    %c0_i32_1 = arith.constant 0 : i32
    return %c0_i32, %c0_i32_0 : i32, i32
  }
  func.func @transform_4(%arg0: i32, %arg1: i32) -> (i32, i32) {
    %c0_i32 = arith.constant 0 : i32
    %c0_i32_0 = arith.constant 0 : i32
    %c0_i32_1 = arith.constant 0 : i32
    return %c0_i32, %c0_i32_0 : i32, i32
  }
  func.func @transform_5(%arg0: i32, %arg1: i32) -> (i32, i32) {
    %c0_i32 = arith.constant 0 : i32
    %c0_i32_0 = arith.constant 0 : i32
    %c0_i32_1 = arith.constant 0 : i32
    return %c0_i32, %c0_i32_0 : i32, i32
  }
  func.func @transform_6(%arg0: i32, %arg1: i32) -> (i32, i32) {
    %c0_i32 = arith.constant 0 : i32
    %c0_i32_0 = arith.constant 0 : i32
    %c0_i32_1 = arith.constant 0 : i32
    return %c0_i32, %c0_i32_0 : i32, i32
  }
  func.func @transform_7(%arg0: i32, %arg1: i32) -> (i32, i32) {
    %c0_i32 = arith.constant 0 : i32
    %c0_i32_0 = arith.constant 0 : i32
    %c0_i32_1 = arith.constant 0 : i32
    return %c0_i32, %c0_i32_0 : i32, i32
  }
  func.func @transform_8(%arg0: i32, %arg1: i32) -> (i32, i32) {
    %c0_i32 = arith.constant 0 : i32
    %c0_i32_0 = arith.constant 0 : i32
    %c0_i32_1 = arith.constant 0 : i32
    return %c0_i32, %c0_i32_0 : i32, i32
  }
  func.func @transform_9(%arg0: i32, %arg1: i32) -> (i32, i32, i32) {
    %c0_i32 = arith.constant 0 : i32
    %c0_i32_0 = arith.constant 0 : i32
    return %arg0, %c0_i32, %arg1 : i32, i32, i32
  }
  func.func @transform_10(%arg0: i32, %arg1: i32) -> (i32, i32, i32) {
    %c0_i32 = arith.constant 0 : i32
    %c0_i32_0 = arith.constant 0 : i32
    return %arg0, %c0_i32, %arg1 : i32, i32, i32
  }
}

</mosaic_0001>

<llo_original>
// kernel: tpu_custom_call.1
$region0: #{tpu_custom_call.1}
  #allocation0 [shape = 'u32[]', space=smem, size = 0x4, offset = 0x4, fixed_abs, tag = 'smem constant byte address 0x4 - core index']
  #allocation1 [shape = 'u32[144,128]{1,0:T(1,128)}', space=vmem, size = 0x12000, scoped, tag = 'internal scratch']
  %s0 = inlined_call_operand.vmem [shape: f32[2,4,256], index: 0, kind: input, shape index: {}]
  %s1 = inlined_call_operand.vmem [shape: f32[2,8,256], index: 1, kind: input, shape index: {}]
  %s2 = inlined_call_operand.vmem [shape: f32[128,4], index: 2, kind: input, shape index: {}]
  %s3 = inlined_call_operand.vmem [shape: f32[128,1], index: 3, kind: input, shape index: {}]
  %s4 = inlined_call_operand.vmem [shape: f32[16,128], index: 4, kind: input, shape index: {}]
  %s5 = inlined_call_operand.vmem [shape: f32[16,1], index: 5, kind: input, shape index: {}]
  %s6 = inlined_call_operand.vmem [shape: f32[8,16], index: 6, kind: input, shape index: {}]
  %s7 = inlined_call_operand.vmem [shape: f32[16,8], index: 7, kind: input, shape index: {}]
  %s8 = inlined_call_operand.vmem [shape: f32[16,16], index: 8, kind: input, shape index: {}]
  %s9 = inlined_call_operand.hbm [shape: f32[2,16,256], index: 9, kind: output, shape index: {0}]
  %s10 = inlined_call_operand.hbm [shape: f32[2,16,256], index: 10, kind: output, shape index: {1}]
  %11 = xla_tuple %s9, %s10
  %s12 = sld [smem:[#allocation0]]
  $region77: #{tpu_custom_call.1} parent=0
    _
  %s14 = ssub.s32 1, %s12
  %s15 = scalar_select 0, %s14, %s12
  $region1: #{tpu_custom_call.1} parent=0
    #allocation2 [shape = 'u8[32768]{0}', space=vmem, size = 0x8000, scoped, tag = 'output window, operand 0']
    #allocation3 [shape = 's32[2]{0}', space=sflag, size = 0x8, scoped, tag = 'scoped memory for tpu_custom_call.1']
    #allocation4 [shape = 'u8[32768]{0}', space=vmem, size = 0x8000, scoped, tag = 'output window, operand 1']
    #allocation5 [shape = 's32[2]{0}', space=sflag, size = 0x8, scoped, tag = 'scoped memory for tpu_custom_call.1']
    %16 = vsyncpa [#allocation3], 0
    %s17 = scalar_lea.sflag [#allocation3], 1
    %18 = vsyncpa %s17, 0
    %19 = vsyncpa [#allocation5], 0
    %s20 = scalar_lea.sflag [#allocation5], 1
    %21 = vsyncpa %s20, 0
    loop: start=0, step=1, limit=4
    $region2: #{tpu_custom_call.1} parent=1 // loop_pre_header
      _
    $region3: #{tpu_custom_call.1} parent=1 // loop_header
      %s23 = sphi 0, %s27
      %p24 = scmp.ge.s32.totalorder %s23, 4
      %s30 = sphi 0, %s42
      %s31 = sphi 0, %s38
      %s32 = sphi 0, %s30
      %s33 = sphi 0, %s31
      %s34 = sphi 0, %s32
      %s35 = sphi 0, %s33
      %s47 = sphi 0, %s49
      %s50 = sphi 0, %s47
      %s51 = sphi 0, %s50
      %s67 = sphi 0, %s51
      %s75 = sphi 0, %s77
      %s78 = sphi 0, %s75
      %s79 = sphi 0, %s78
      %s95 = sphi 0, %s79
      %s99 = sphi 0, %s99
      %s101 = sphi 0, %s99
      %s102 = sphi 0, %s101
      %s116 = sphi 0, %s102
      %s120 = sphi 0, %s120
      %s122 = sphi 0, %s120
      %s123 = sphi 0, %s122
      %s137 = sphi 0, %s123
      %s141 = sphi 0, %s141
      %s143 = sphi 0, %s141
      %s144 = sphi 0, %s143
      %s158 = sphi 0, %s144
      %s162 = sphi 0, %s162
      %s164 = sphi 0, %s162
      %s165 = sphi 0, %s164
      %s179 = sphi 0, %s165
      %s183 = sphi 0, %s183
      %s185 = sphi 0, %s183
      %s186 = sphi 0, %s185
      %s200 = sphi 0, %s186
      %s204 = sphi 0, %s204
      %s206 = sphi 0, %s204
      %s207 = sphi 0, %s206
      %s221 = sphi 0, %s207
      %s225 = sphi 0, %s225
      %s227 = sphi 0, %s225
      %s228 = sphi 0, %s227
      %s242 = sphi 0, %s228
      %s250 = sphi 0, %s252
      %s253 = sphi 0, %s250
      %s254 = sphi 0, %s253
      %s270 = sphi 0, %s254
      %s278 = sphi 0, %s280
      %s281 = sphi 0, %s278
      %s282 = sphi 0, %s281
      %s298 = sphi 0, %s282
    $region4: #{tpu_custom_call.1} parent=1 // loop_header_branch
      %26 = sbr.rel (%p24) target = $region8
    $region5: #{tpu_custom_call.1} parent=1 // loop_body
      %s28 = ssub.s32 %s23, 1
      %s29 = ssub.s32 %s23, 2
      %s36 = sadd.s32 1, %s31
      %p37 = scmp.ge.s32.totalorder %s36, 1
      %s38 = scalar_select %p37, 0, %s36
      %s39 = sadd.s32 1, %s30
      %s40 = scalar_select %p37, %s39, %s30
      %p41 = scmp.ge.s32.totalorder %s40, 2
      %s42 = scalar_select %p41, 0, %s40
      %s43 = ssub.s32 %s30, %s42
      %s44 = ssub.s32 %s31, %s38
      %s45 = sor.u32 %s43, %s44
      %p46 = scmp.eq.s32.totalorder %s45, 0
      %s48 = sadd.s32 %s47, 1
      %s49 = scalar_select %p46, %s47, %s48
      %p52 = pneg %p46
      %p53 = scmp.eq.s32.totalorder %s23, 1
      %p54 = por %p52, %p53
      %p55 = scmp.ne.s32.totalorder %s47, %s50
      %p56 = scmp.eq.s32.totalorder %s23, 0
      %p57 = por %p55, %p56
      %p58 = scmp.ne.s32.totalorder %s47, %s50
      %p59 = scmp.eq.s32.totalorder %s28, 1
      %p60 = por %p58, %p59
      %p61 = scmp.ne.s32.totalorder %s50, %s51
      %p62 = scmp.eq.s32.totalorder %s28, 0
      %p63 = por %p61, %p62
      %p64 = scmp.ne.s32.totalorder %s50, %s51
      %p65 = scmp.eq.s32.totalorder %s29, 1
      %p66 = por %p64, %p65
      %p68 = scmp.ne.s32.totalorder %s51, %s67
      %p69 = scmp.eq.s32.totalorder %s29, 0
      %p70 = por %p68, %p69
      %s71 = ssub.s32 %s30, %s42
      %s72 = ssub.s32 %s31, %s38
      %s73 = sor.u32 %s71, %s72
      %p74 = scmp.eq.s32.totalorder %s73, 0
      %s76 = sadd.s32 %s75, 1
      %s77 = scalar_select %p74, %s75, %s76
      %p80 = pneg %p74
      %p81 = scmp.eq.s32.totalorder %s23, 1
      %p82 = por %p80, %p81
      %p83 = scmp.ne.s32.totalorder %s75, %s78
      %p84 = scmp.eq.s32.totalorder %s23, 0
      %p85 = por %p83, %p84
      %p86 = scmp.ne.s32.totalorder %s75, %s78
      %p87 = scmp.eq.s32.totalorder %s28, 1
      %p88 = por %p86, %p87
      %p89 = scmp.ne.s32.totalorder %s78, %s79
      %p90 = scmp.eq.s32.totalorder %s28, 0
      %p91 = por %p89, %p90
      %p92 = scmp.ne.s32.totalorder %s78, %s79
      %p93 = scmp.eq.s32.totalorder %s29, 1
      %p94 = por %p92, %p93
      %p96 = scmp.ne.s32.totalorder %s79, %s95
      %p97 = scmp.eq.s32.totalorder %s29, 0
      %p98 = por %p96, %p97
      %s100 = sadd.s32 %s99, 1
      %p103 = scmp.eq.s32.totalorder %s23, 1
      %p104 = scmp.ne.s32.totalorder %s99, %s101
      %p105 = scmp.eq.s32.totalorder %s23, 0
      %p106 = por %p104, %p105
      %p107 = scmp.ne.s32.totalorder %s99, %s101
      %p108 = scmp.eq.s32.totalorder %s28, 1
      %p109 = por %p107, %p108
      %p110 = scmp.ne.s32.totalorder %s101, %s102
      %p111 = scmp.eq.s32.totalorder %s28, 0
      %p112 = por %p110, %p111
      %p113 = scmp.ne.s32.totalorder %s101, %s102
      %p114 = scmp.eq.s32.totalorder %s29, 1
      %p115 = por %p113, %p114
      %p117 = scmp.ne.s32.totalorder %s102, %s116
      %p118 = scmp.eq.s32.totalorder %s29, 0
      %p119 = por %p117, %p118
      %s121 = sadd.s32 %s120, 1
      %p124 = scmp.eq.s32.totalorder %s23, 1
      %p125 = scmp.ne.s32.totalorder %s120, %s122
      %p126 = scmp.eq.s32.totalorder %s23, 0
      %p127 = por %p125, %p126
      %p128 = scmp.ne.s32.totalorder %s120, %s122
      %p129 = scmp.eq.s32.totalorder %s28, 1
      %p130 = por %p128, %p129
      %p131 = scmp.ne.s32.totalorder %s122, %s123
      %p132 = scmp.eq.s32.totalorder %s28, 0
      %p133 = por %p131, %p132
      %p134 = scmp.ne.s32.totalorder %s122, %s123
      %p135 = scmp.eq.s32.totalorder %s29, 1
      %p136 = por %p134, %p135
      %p138 = scmp.ne.s32.totalorder %s123, %s137
      %p139 = scmp.eq.s32.totalorder %s29, 0
      %p140 = por %p138, %p139
      %s142 = sadd.s32 %s141, 1
      %p145 = scmp.eq.s32.totalorder %s23, 1
      %p146 = scmp.ne.s32.totalorder %s141, %s143
      %p147 = scmp.eq.s32.totalorder %s23, 0
      %p148 = por %p146, %p147
      %p149 = scmp.ne.s32.totalorder %s141, %s143
      %p150 = scmp.eq.s32.totalorder %s28, 1
      %p151 = por %p149, %p150
      %p152 = scmp.ne.s32.totalorder %s143, %s144
      %p153 = scmp.eq.s32.totalorder %s28, 0
      %p154 = por %p152, %p153
      %p155 = scmp.ne.s32.totalorder %s143, %s144
      %p156 = scmp.eq.s32.totalorder %s29, 1
      %p157 = por %p155, %p156
      %p159 = scmp.ne.s32.totalorder %s144, %s158
      %p160 = scmp.eq.s32.totalorder %s29, 0
      %p161 = por %p159, %p160
      %s163 = sadd.s32 %s162, 1
      %p166 = scmp.eq.s32.totalorder %s23, 1
      %p167 = scmp.ne.s32.totalorder %s162, %s164
      %p168 = scmp.eq.s32.totalorder %s23, 0
      %p169 = por %p167, %p168
      %p170 = scmp.ne.s32.totalorder %s162, %s164
      %p171 = scmp.eq.s32.totalorder %s28, 1
      %p172 = por %p170, %p171
      %p173 = scmp.ne.s32.totalorder %s164, %s165
      %p174 = scmp.eq.s32.totalorder %s28, 0
      %p175 = por %p173, %p174
      %p176 = scmp.ne.s32.totalorder %s164, %s165
      %p177 = scmp.eq.s32.totalorder %s29, 1
      %p178 = por %p176, %p177
      %p180 = scmp.ne.s32.totalorder %s165, %s179
      %p181 = scmp.eq.s32.totalorder %s29, 0
      %p182 = por %p180, %p181
      %s184 = sadd.s32 %s183, 1
      %p187 = scmp.eq.s32.totalorder %s23, 1
      %p188 = scmp.ne.s32.totalorder %s183, %s185
      %p189 = scmp.eq.s32.totalorder %s23, 0
      %p190 = por %p188, %p189
      %p191 = scmp.ne.s32.totalorder %s183, %s185
      %p192 = scmp.eq.s32.totalorder %s28, 1
      %p193 = por %p191, %p192
      %p194 = scmp.ne.s32.totalorder %s185, %s186
      %p195 = scmp.eq.s32.totalorder %s28, 0
      %p196 = por %p194, %p195
      %p197 = scmp.ne.s32.totalorder %s185, %s186
      %p198 = scmp.eq.s32.totalorder %s29, 1
      %p199 = por %p197, %p198
      %p201 = scmp.ne.s32.totalorder %s186, %s200
      %p202 = scmp.eq.s32.totalorder %s29, 0
      %p203 = por %p201, %p202
      %s205 = sadd.s32 %s204, 1
      %p208 = scmp.eq.s32.totalorder %s23, 1
      %p209 = scmp.ne.s32.totalorder %s204, %s206
      %p210 = scmp.eq.s32.totalorder %s23, 0
      %p211 = por %p209, %p210
      %p212 = scmp.ne.s32.totalorder %s204, %s206
      %p213 = scmp.eq.s32.totalorder %s28, 1
      %p214 = por %p212, %p213
      %p215 = scmp.ne.s32.totalorder %s206, %s207
      %p216 = scmp.eq.s32.totalorder %s28, 0
      %p217 = por %p215, %p216
      %p218 = scmp.ne.s32.totalorder %s206, %s207
      %p219 = scmp.eq.s32.totalorder %s29, 1
      %p220 = por %p218, %p219
      %p222 = scmp.ne.s32.totalorder %s207, %s221
      %p223 = scmp.eq.s32.totalorder %s29, 0
      %p224 = por %p222, %p223
      %s226 = sadd.s32 %s225, 1
      %p229 = scmp.eq.s32.totalorder %s23, 1
      %p230 = scmp.ne.s32.totalorder %s225, %s227
      %p231 = scmp.eq.s32.totalorder %s23, 0
      %p232 = por %p230, %p231
      %p233 = scmp.ne.s32.totalorder %s225, %s227
      %p234 = scmp.eq.s32.totalorder %s28, 1
      %p235 = por %p233, %p234
      %p236 = scmp.ne.s32.totalorder %s227, %s228
      %p237 = scmp.eq.s32.totalorder %s28, 0
      %p238 = por %p236, %p237
      %p239 = scmp.ne.s32.totalorder %s227, %s228
      %p240 = scmp.eq.s32.totalorder %s29, 1
      %p241 = por %p239, %p240
      %p243 = scmp.ne.s32.totalorder %s228, %s242
      %p244 = scmp.eq.s32.totalorder %s29, 0
      %p245 = por %p243, %p244
      %s246 = ssub.s32 %s30, %s42
      %s247 = ssub.s32 %s31, %s38
      %s248 = sor.u32 %s246, %s247
      %p249 = scmp.eq.s32.totalorder %s248, 0
      %s251 = sadd.s32 %s250, 1
      %s252 = scalar_select %p249, %s250, %s251
      %p255 = pneg %p249
      %p256 = scmp.eq.s32.totalorder %s23, 1
      %p257 = por %p255, %p256
      %p258 = scmp.ne.s32.totalorder %s250, %s253
      %p259 = scmp.eq.s32.totalorder %s23, 0
      %p260 = por %p258, %p259
      %p261 = scmp.ne.s32.totalorder %s250, %s253
      %p262 = scmp.eq.s32.totalorder %s28, 1
      %p263 = por %p261, %p262
      %p264 = scmp.ne.s32.totalorder %s253, %s254
      %p265 = scmp.eq.s32.totalorder %s28, 0
      %p266 = por %p264, %p265
      %p267 = scmp.ne.s32.totalorder %s253, %s254
      %p268 = scmp.eq.s32.totalorder %s29, 1
      %p269 = por %p267, %p268
      %p271 = scmp.ne.s32.totalorder %s254, %s270
      %p272 = scmp.eq.s32.totalorder %s29, 0
      %p273 = por %p271, %p272
      %s274 = ssub.s32 %s30, %s42
      %s275 = ssub.s32 %s31, %s38
      %s276 = sor.u32 %s274, %s275
      %p277 = scmp.eq.s32.totalorder %s276, 0
      %s279 = sadd.s32 %s278, 1
      %s280 = scalar_select %p277, %s278, %s279
      %p283 = pneg %p277
      %p284 = scmp.eq.s32.totalorder %s23, 1
      %p285 = por %p283, %p284
      %p286 = scmp.ne.s32.totalorder %s278, %s281
      %p287 = scmp.eq.s32.totalorder %s23, 0
      %p288 = por %p286, %p287
      %p289 = scmp.ne.s32.totalorder %s278, %s281
      %p290 = scmp.eq.s32.totalorder %s28, 1
      %p291 = por %p289, %p290
      %p292 = scmp.ne.s32.totalorder %s281, %s282
      %p293 = scmp.eq.s32.totalorder %s28, 0
      %p294 = por %p292, %p293
      %p295 = scmp.ne.s32.totalorder %s281, %s282
      %p296 = scmp.eq.s32.totalorder %s29, 1
      %p297 = por %p295, %p296
      %p299 = scmp.ne.s32.totalorder %s282, %s298
      %p300 = scmp.eq.s32.totalorder %s29, 0
      %p301 = por %p299, %p300
      %p302 = scmp.le.s32.totalorder 1, %s23
      %p303 = scmp.lt.s32.totalorder %s23, 3
      %p304 = pnand %p302, %p303
      %p305 = pneg %p304
      // Predicated region
      $region9: #{tpu_custom_call.1} parent=5 // pred_check
        _
      $region10: #{tpu_custom_call.1} parent=5 // pred_check_branch
        %307 = sbr.rel (%p304) target = $region12
      $region11: #{tpu_custom_call.1} parent=5 // pred_region
        %s308 = ssub.s32 %s23, 1
        // Predicated region
        $region13: #{tpu_custom_call.1} parent=11 // pred_check
          %p309 = pneg %p112
        $region14: #{tpu_custom_call.1} parent=11 // pred_check_branch
          %311 = sbr.rel (%p309) target = $region16
        $region15: #{tpu_custom_call.1} parent=11 // pred_region
          _
        $region16: #{tpu_custom_call.1} parent=11 // pred_fallthru
          _
        // Predicated region
        $region17: #{tpu_custom_call.1} parent=11 // pred_check
          %p312 = pneg %p133
        $region18: #{tpu_custom_call.1} parent=11 // pred_check_branch
          %314 = sbr.rel (%p312) target = $region20
        $region19: #{tpu_custom_call.1} parent=11 // pred_region
          _
        $region20: #{tpu_custom_call.1} parent=11 // pred_fallthru
          _
        // Predicated region
        $region21: #{tpu_custom_call.1} parent=11 // pred_check
          %p315 = pneg %p154
        $region22: #{tpu_custom_call.1} parent=11 // pred_check_branch
          %317 = sbr.rel (%p315) target = $region24
        $region23: #{tpu_custom_call.1} parent=11 // pred_region
          _
        $region24: #{tpu_custom_call.1} parent=11 // pred_fallthru
          _
        // Predicated region
        $region25: #{tpu_custom_call.1} parent=11 // pred_check
          %p318 = pneg %p175
        $region26: #{tpu_custom_call.1} parent=11 // pred_check_branch
          %320 = sbr.rel (%p318) target = $region28
        $region27: #{tpu_custom_call.1} parent=11 // pred_region
          _
        $region28: #{tpu_custom_call.1} parent=11 // pred_fallthru
          _
        // Predicated region
        $region29: #{tpu_custom_call.1} parent=11 // pred_check
          %p321 = pneg %p196
        $region30: #{tpu_custom_call.1} parent=11 // pred_check_branch
          %323 = sbr.rel (%p321) target = $region32
        $region31: #{tpu_custom_call.1} parent=11 // pred_region
          _
        $region32: #{tpu_custom_call.1} parent=11 // pred_fallthru
          _
        // Predicated region
        $region33: #{tpu_custom_call.1} parent=11 // pred_check
          %p324 = pneg %p217
        $region34: #{tpu_custom_call.1} parent=11 // pred_check_branch
          %326 = sbr.rel (%p324) target = $region36
        $region35: #{tpu_custom_call.1} parent=11 // pred_region
          _
        $region36: #{tpu_custom_call.1} parent=11 // pred_fallthru
          _
        // Predicated region
        $region37: #{tpu_custom_call.1} parent=11 // pred_check
          %p327 = pneg %p238
        $region38: #{tpu_custom_call.1} parent=11 // pred_check_branch
          %329 = sbr.rel (%p327) target = $region40
        $region39: #{tpu_custom_call.1} parent=11 // pred_region
          _
        $region40: #{tpu_custom_call.1} parent=11 // pred_fallthru
          _
      $region12: #{tpu_custom_call.1} parent=5 // pred_fallthru
        _
      %p330 = scmp.lt.s32.totalorder %s23, 2
      // Predicated region
      $region41: #{tpu_custom_call.1} parent=5 // pred_check
        %p331 = pneg %p330
      $region42: #{tpu_custom_call.1} parent=5 // pred_check_branch
        %333 = sbr.rel (%p331) target = $region44
      $region43: #{tpu_custom_call.1} parent=5 // pred_region
        // Predicated region
        $region45: #{tpu_custom_call.1} parent=43 // pred_check
          %p334 = pneg %p57
        $region46: #{tpu_custom_call.1} parent=43 // pred_check_branch
          %336 = sbr.rel (%p334) target = $region48
        $region47: #{tpu_custom_call.1} parent=43 // pred_region
          %s337 = smul.u32 2, %s31
          %p338 = scmp.lt.s32.totalorder %s30, 1
          %s339 = scalar_select %p338, %s30, 1
          %p340 = scmp.lt.s32.totalorder %s337, 1
          %s341 = scalar_select %p340, %s337, 1
          %s342 = smul.addr %s339, 2
          %s343 = sadd.s32 %s341, %s342
          %s344 = smul.addr %s343, 4
          %s345 = scalar_lea.vmem %s0, %s344
          %s346 = smul.u32 2, %s31
        $region48: #{tpu_custom_call.1} parent=43 // pred_fallthru
          _
        // Predicated region
        $region49: #{tpu_custom_call.1} parent=43 // pred_check
          %p347 = pneg %p85
        $region50: #{tpu_custom_call.1} parent=43 // pred_check_branch
          %349 = sbr.rel (%p347) target = $region52
        $region51: #{tpu_custom_call.1} parent=43 // pred_region
          %s350 = smul.u32 2, %s31
          %p351 = scmp.lt.s32.totalorder %s30, 1
          %s352 = scalar_select %p351, %s30, 1
          %p353 = scmp.lt.s32.totalorder %s350, 1
          %s354 = scalar_select %p353, %s350, 1
          %s355 = smul.addr %s352, 2
          %s356 = sadd.s32 %s354, %s355
          %s357 = smul.addr %s356, 8
          %s358 = scalar_lea.vmem %s1, %s357
          %s359 = smul.u32 2, %s31
        $region52: #{tpu_custom_call.1} parent=43 // pred_fallthru
          _
      $region44: #{tpu_custom_call.1} parent=5 // pred_fallthru
        _
      %p360 = scmp.le.s32.totalorder 1, %s23
      %p361 = scmp.lt.s32.totalorder %s23, 3
      %p362 = pnand %p360, %p361
      %p363 = pneg %p362
      // Predicated region
      $region53: #{tpu_custom_call.1} parent=5 // pred_check
        _
      $region54: #{tpu_custom_call.1} parent=5 // pred_check_branch
        %365 = sbr.rel (%p362) target = $region56
      $region55: #{tpu_custom_call.1} parent=5 // pred_region
        %s366 = ssub.s32 %s23, 1
        %s367 = smul.u32 2, %s33
        %p368 = scmp.lt.s32.totalorder %s32, 1
        %s369 = scalar_select %p368, %s32, 1
        %p370 = scmp.lt.s32.totalorder %s367, 1
        %s371 = scalar_select %p370, %s367, 1
        %s372 = smul.addr %s369, 2
        %s373 = sadd.s32 %s371, %s372
        %s374 = smul.addr %s373, 4
        %s375 = scalar_lea.vmem %s0, %s374
        %p376 = pneg %p63
        %p377 = pneg %p60
        %s378 = smul.u32 2, %s33
        %p379 = scmp.lt.s32.totalorder %s32, 1
        %s380 = scalar_select %p379, %s32, 1
        %p381 = scmp.lt.s32.totalorder %s378, 1
        %s382 = scalar_select %p381, %s378, 1
        %s383 = smul.addr %s380, 2
        %s384 = sadd.s32 %s382, %s383
        %s385 = smul.addr %s384, 8
        %s386 = scalar_lea.vmem %s1, %s385
        %p387 = pneg %p91
        %p388 = pneg %p88
        %p389 = pneg %p112
        %p390 = pneg %p109
        %p391 = pneg %p133
        %p392 = pneg %p130
        %p393 = pneg %p154
        %p394 = pneg %p151
        %p395 = pneg %p175
        %p396 = pneg %p172
        %p397 = pneg %p196
        %p398 = pneg %p193
        %p399 = pneg %p217
        %p400 = pneg %p214
        %p401 = pneg %p238
        %p402 = pneg %p235
        %p403 = pneg %p266
        %p404 = pneg %p263
        %s405 = sand.u32 %s253, 1
        %s406 = scalar_lea.sflag [#allocation3], %s405
        %s407 = sand.u32 %s253, 1
        %s408 = smul.addr %s407, 32
        %s409 = scalar_lea.vmem [#allocation2], %s408
        %p410 = pneg %p294
        %p411 = pneg %p291
        %s412 = sand.u32 %s281, 1
        %s413 = scalar_lea.sflag [#allocation5], %s412
        %s414 = sand.u32 %s281, 1
        %s415 = smul.addr %s414, 32
        %s416 = scalar_lea.vmem [#allocation4], %s415
        %s417 = smul.u32 2, %s33
        %p418 = scmp.lt.s32.totalorder %s32, 1
        %s419 = scalar_select %p418, %s32, 1
        %p420 = scmp.lt.s32.totalorder %s417, 1
        %s421 = scalar_select %p420, %s417, 1
        %s422 = smul.addr %s419, 2
        %s423 = sadd.s32 %s421, %s422
        %s424 = smul.addr %s423, 4
        %s425 = scalar_lea.vmem %s0, %s424
        %s426 = smul.u32 2, %s33
        %s427 = smul.u32 2, %s33
        %p428 = scmp.lt.s32.totalorder %s32, 1
        %s429 = scalar_select %p428, %s32, 1
        %p430 = scmp.lt.s32.totalorder %s427, 1
        %s431 = scalar_select %p430, %s427, 1
        %s432 = smul.addr %s429, 2
        %s433 = sadd.s32 %s431, %s432
        %s434 = smul.addr %s433, 8
        %s435 = scalar_lea.vmem %s1, %s434
        %s436 = smul.u32 2, %s33
        %s437 = smul.u32 2, %s33
        %s438 = smul.u32 2, %s33
        %v439 = vld [vmem:[%s425] sm:$0xff]
        %v440 = vld [vmem:[%s435] sm:$0xff]
        %v441 = vld [vmem:[%s435 + $0x8] sm:$0xff]
        %v442 = vld [vmem:[%s2] sm:$0xff]
        %v443 = vld [vmem:[%s2 + $0x8] sm:$0xff]
        %v444 = vld [vmem:[%s2 + $0x10] sm:$0xff]
        %v445 = vld [vmem:[%s2 + $0x18] sm:$0xff]
        %v446 = vld [vmem:[%s2 + $0x20] sm:$0xff]
        %v447 = vld [vmem:[%s2 + $0x28] sm:$0xff]
        %v448 = vld [vmem:[%s2 + $0x30] sm:$0xff]
        %v449 = vld [vmem:[%s2 + $0x38] sm:$0xff]
        %v450 = vld [vmem:[%s2 + $0x40] sm:$0xff]
        %v451 = vld [vmem:[%s2 + $0x48] sm:$0xff]
        %v452 = vld [vmem:[%s2 + $0x50] sm:$0xff]
        %v453 = vld [vmem:[%s2 + $0x58] sm:$0xff]
        %v454 = vld [vmem:[%s2 + $0x60] sm:$0xff]
        %v455 = vld [vmem:[%s2 + $0x68] sm:$0xff]
        %v456 = vld [vmem:[%s2 + $0x70] sm:$0xff]
        %v457 = vld [vmem:[%s2 + $0x78] sm:$0xff]
        %v458 = vld [vmem:[%s3] sm:$0xff]
        %v459 = vld [vmem:[%s3 + $0x8] sm:$0xff]
        %v460 = vld [vmem:[%s3 + $0x10] sm:$0xff]
        %v461 = vld [vmem:[%s3 + $0x18] sm:$0xff]
        %v462 = vld [vmem:[%s3 + $0x20] sm:$0xff]
        %v463 = vld [vmem:[%s3 + $0x28] sm:$0xff]
        %v464 = vld [vmem:[%s3 + $0x30] sm:$0xff]
        %v465 = vld [vmem:[%s3 + $0x38] sm:$0xff]
        %v466 = vld [vmem:[%s3 + $0x40] sm:$0xff]
        %v467 = vld [vmem:[%s3 + $0x48] sm:$0xff]
        %v468 = vld [vmem:[%s3 + $0x50] sm:$0xff]
        %v469 = vld [vmem:[%s3 + $0x58] sm:$0xff]
        %v470 = vld [vmem:[%s3 + $0x60] sm:$0xff]
        %v471 = vld [vmem:[%s3 + $0x68] sm:$0xff]
        %v472 = vld [vmem:[%s3 + $0x70] sm:$0xff]
        %v473 = vld [vmem:[%s3 + $0x78] sm:$0xff]
        %475 = vset.pattern.permute.xlu0 0
        %476 = vperm.xlu0 %475, %v458
        %v477 = vpop.permute.xlu0 %476
        %480 = vset.pattern.permute.xlu0 0
        %481 = vperm.xlu0 %480, %v459
        %v482 = vpop.permute.xlu0 %481
        %485 = vset.pattern.permute.xlu0 0
        %486 = vperm.xlu0 %485, %v460
        %v487 = vpop.permute.xlu0 %486
        %490 = vset.pattern.permute.xlu0 0
        %491 = vperm.xlu0 %490, %v461
        %v492 = vpop.permute.xlu0 %491
        %495 = vset.pattern.permute.xlu0 0
        %496 = vperm.xlu0 %495, %v462
        %v497 = vpop.permute.xlu0 %496
        %500 = vset.pattern.permute.xlu0 0
        %501 = vperm.xlu0 %500, %v463
        %v502 = vpop.permute.xlu0 %501
        %505 = vset.pattern.permute.xlu0 0
        %506 = vperm.xlu0 %505, %v464
        %v507 = vpop.permute.xlu0 %506
        %510 = vset.pattern.permute.xlu0 0
        %511 = vperm.xlu0 %510, %v465
        %v512 = vpop.permute.xlu0 %511
        %515 = vset.pattern.permute.xlu0 0
        %516 = vperm.xlu0 %515, %v466
        %v517 = vpop.permute.xlu0 %516
        %520 = vset.pattern.permute.xlu0 0
        %521 = vperm.xlu0 %520, %v467
        %v522 = vpop.permute.xlu0 %521
        %525 = vset.pattern.permute.xlu0 0
        %526 = vperm.xlu0 %525, %v468
        %v527 = vpop.permute.xlu0 %526
        %530 = vset.pattern.permute.xlu0 0
        %531 = vperm.xlu0 %530, %v469
        %v532 = vpop.permute.xlu0 %531
        %535 = vset.pattern.permute.xlu0 0
        %536 = vperm.xlu0 %535, %v470
        %v537 = vpop.permute.xlu0 %536
        %540 = vset.pattern.permute.xlu0 0
        %541 = vperm.xlu0 %540, %v471
        %v542 = vpop.permute.xlu0 %541
        %545 = vset.pattern.permute.xlu0 0
        %546 = vperm.xlu0 %545, %v472
        %v547 = vpop.permute.xlu0 %546
        %550 = vset.pattern.permute.xlu0 0
        %551 = vperm.xlu0 %550, %v473
        %v552 = vpop.permute.xlu0 %551
        %v555 = vcombine.high %v439, %v439
        %vm556 = vcmask 31744
        %v558 = vsel %vm556, %v442, 0
        %v561 = vsel %vm556, %v443, 0
        %v564 = vsel %vm556, %v444, 0
        %v567 = vsel %vm556, %v445, 0
        %v570 = vsel %vm556, %v446, 0
        %v573 = vsel %vm556, %v447, 0
        %v576 = vsel %vm556, %v448, 0
        %v579 = vsel %vm556, %v449, 0
        %v582 = vsel %vm556, %v450, 0
        %v585 = vsel %vm556, %v451, 0
        %v588 = vsel %vm556, %v452, 0
        %v591 = vsel %vm556, %v453, 0
        %v594 = vsel %vm556, %v454, 0
        %v597 = vsel %vm556, %v455, 0
        %v600 = vsel %vm556, %v456, 0
        %v603 = vsel %vm556, %v457, 0
        %vm605 = vcmask 1043456
        %v606 = vsel %vm605, %v439, 0
        %v608 = vsel %vm605, %v555, 0
        %610 = vmatprep.subr.mxu0 0.0
        %611 = vmatpush1.msra.mxu0 0.0
        %612 = vmatprep.subr.mxu0 0.0
        %613 = vmatpush1.msra.mxu0 0.0
        %614 = vmatprep.subr.mxu0 0.0
        %615 = vmatpush1.msra.mxu0 0.0
        %616 = vmatprep.subr.mxu0 0.0
        %617 = vmatpush1.msra.mxu0 0.0
        %618 = vmatprep.subr.mxu0 0.0
        %619 = vmatpush1.msra.mxu0 0.0
        %620 = vmatprep.subr.mxu0 0.0
        %621 = vmatpush1.msra.mxu0 0.0
        %622 = vmatprep.subr.mxu0 0.0
        %623 = vmatpush1.msra.mxu0 0.0
        %624 = vmatprep.subr.mxu0 0.0
        %625 = vmatpush1.msra.mxu0 0.0
        %626 = vmatprep.subr.mxu0 0.0
        %627 = vmatpush1.msra.mxu0 0.0
        %628 = vmatprep.subr.mxu0 0.0
        %629 = vmatpush1.msra.mxu0 0.0
        %630 = vmatprep.subr.mxu0 0.0
        %631 = vmatpush1.msra.mxu0 0.0
        %632 = vmatprep.subr.mxu0 0.0
        %633 = vmatpush1.msra.mxu0 0.0
        %634 = vmatprep.subr.mxu0 0.0
        %635 = vmatpush1.msra.mxu0 0.0
        %636 = vmatprep.subr.mxu0 0.0
        %637 = vmatpush1.msra.mxu0 0.0
        %638 = vmatprep.subr.mxu0 0.0
        %639 = vmatpush1.msra.mxu0 0.0
        %640 = vmatprep.subr.mxu0 %v608
        %641 = vmatpush1.msra.mxu0 %v606
        %642 = vmatprep.subr.mxu0 0.0
        %643 = vmatpush2.msra.mxu0 0.0
        %644 = vmatprep.subr.mxu0 0.0
        %645 = vmatpush2.msra.mxu0 0.0
        %646 = vmatprep.subr.mxu0 0.0
        %647 = vmatpush2.msra.mxu0 0.0
        %648 = vmatprep.subr.mxu0 0.0
        %649 = vmatpush2.msra.mxu0 0.0
        %650 = vmatprep.subr.mxu0 0.0
        %651 = vmatpush2.msra.mxu0 0.0
        %652 = vmatprep.subr.mxu0 0.0
        %653 = vmatpush2.msra.mxu0 0.0
        %654 = vmatprep.subr.mxu0 0.0
        %655 = vmatpush2.msra.mxu0 0.0
        %656 = vmatprep.subr.mxu0 0.0
        %657 = vmatpush2.msra.mxu0 0.0
        %658 = vmatprep.subr.mxu0 0.0
        %659 = vmatpush2.msra.mxu0 0.0
        %660 = vmatprep.subr.mxu0 0.0
        %661 = vmatpush2.msra.mxu0 0.0
        %662 = vmatprep.subr.mxu0 0.0
        %663 = vmatpush2.msra.mxu0 0.0
        %664 = vmatprep.subr.mxu0 0.0
        %665 = vmatpush2.msra.mxu0 0.0
        %666 = vmatprep.subr.mxu0 0.0
        %667 = vmatpush2.msra.mxu0 0.0
        %668 = vmatprep.subr.mxu0 0.0
        %669 = vmatpush2.msra.mxu0 0.0
        %670 = vmatprep.subr.mxu0 0.0
        %671 = vmatpush2.msra.mxu0 0.0
        %672 = vmatprep.subr.mxu0 0.0
        %673 = vmatpush2.msra.mxu0 0.0
        %674 = vmatprep.mubr.f32.mxu0 0.0
        %675 = vmatmul.mubr.f32.gmra.mxu0 %v558
        %v676 = vpop.f32.mrf.mxu0
        %v677 = vadd.f32 %v477, %v676
        %v678 = vpop.f32.mrf.mxu0
        %v679 = vadd.f32 %v477, %v678
        %680 = vmatprep.mubr.f32.mxu0 0.0
        %681 = vmatmul.mubr.f32.gmra.mxu0 %v561
        %v682 = vpop.f32.mrf.mxu0
        %v683 = vadd.f32 %v482, %v682
        %v684 = vpop.f32.mrf.mxu0
        %v685 = vadd.f32 %v482, %v684
        %686 = vmatprep.mubr.f32.mxu0 0.0
        %687 = vmatmul.mubr.f32.gmra.mxu0 %v564
        %v688 = vpop.f32.mrf.mxu0
        %v689 = vadd.f32 %v487, %v688
        %v690 = vpop.f32.mrf.mxu0
        %v691 = vadd.f32 %v487, %v690
        %692 = vmatprep.mubr.f32.mxu0 0.0
        %693 = vmatmul.mubr.f32.gmra.mxu0 %v567
        %v694 = vpop.f32.mrf.mxu0
        %v695 = vadd.f32 %v492, %v694
        %v696 = vpop.f32.mrf.mxu0
        %v697 = vadd.f32 %v492, %v696
        %698 = vmatprep.mubr.f32.mxu0 0.0
        %699 = vmatmul.mubr.f32.gmra.mxu0 %v570
        %v700 = vpop.f32.mrf.mxu0
        %v701 = vadd.f32 %v497, %v700
        %v702 = vpop.f32.mrf.mxu0
        %v703 = vadd.f32 %v497, %v702
        %704 = vmatprep.mubr.f32.mxu0 0.0
        %705 = vmatmul.mubr.f32.gmra.mxu0 %v573
        %v706 = vpop.f32.mrf.mxu0
        %v707 = vadd.f32 %v502, %v706
        %v708 = vpop.f32.mrf.mxu0
        %v709 = vadd.f32 %v502, %v708
        %710 = vmatprep.mubr.f32.mxu0 0.0
        %711 = vmatmul.mubr.f32.gmra.mxu0 %v576
        %v712 = vpop.f32.mrf.mxu0
        %v713 = vadd.f32 %v507, %v712
        %v714 = vpop.f32.mrf.mxu0
        %v715 = vadd.f32 %v507, %v714
        %716 = vmatprep.mubr.f32.mxu0 0.0
        %717 = vmatmul.mubr.f32.gmra.mxu0 %v579
        %v718 = vpop.f32.mrf.mxu0
        %v719 = vadd.f32 %v512, %v718
        %v720 = vpop.f32.mrf.mxu0
        %v721 = vadd.f32 %v512, %v720
        %722 = vmatprep.mubr.f32.mxu0 0.0
        %723 = vmatmul.mubr.f32.gmra.mxu0 %v582
        %v724 = vpop.f32.mrf.mxu0
        %v725 = vadd.f32 %v517, %v724
        %v726 = vpop.f32.mrf.mxu0
        %v727 = vadd.f32 %v517, %v726
        %728 = vmatprep.mubr.f32.mxu0 0.0
        %729 = vmatmul.mubr.f32.gmra.mxu0 %v585
        %v730 = vpop.f32.mrf.mxu0
        %v731 = vadd.f32 %v522, %v730
        %v732 = vpop.f32.mrf.mxu0
        %v733 = vadd.f32 %v522, %v732
        %734 = vmatprep.mubr.f32.mxu0 0.0
        %735 = vmatmul.mubr.f32.gmra.mxu0 %v588
        %v736 = vpop.f32.mrf.mxu0
        %v737 = vadd.f32 %v527, %v736
        %v738 = vpop.f32.mrf.mxu0
        %v739 = vadd.f32 %v527, %v738
        %740 = vmatprep.mubr.f32.mxu0 0.0
        %741 = vmatmul.mubr.f32.gmra.mxu0 %v591
        %v742 = vpop.f32.mrf.mxu0
        %v743 = vadd.f32 %v532, %v742
        %v744 = vpop.f32.mrf.mxu0
        %v745 = vadd.f32 %v532, %v744
        %746 = vmatprep.mubr.f32.mxu0 0.0
        %747 = vmatmul.mubr.f32.gmra.mxu0 %v594
        %v748 = vpop.f32.mrf.mxu0
        %v749 = vadd.f32 %v537, %v748
        %v750 = vpop.f32.mrf.mxu0
        %v751 = vadd.f32 %v537, %v750
        %752 = vmatprep.mubr.f32.mxu0 0.0
        %753 = vmatmul.mubr.f32.gmra.mxu0 %v597
        %v754 = vpop.f32.mrf.mxu0
        %v755 = vadd.f32 %v542, %v754
        %v756 = vpop.f32.mrf.mxu0
        %v757 = vadd.f32 %v542, %v756
        %758 = vmatprep.mubr.f32.mxu0 0.0
        %759 = vmatmul.mubr.f32.gmra.mxu0 %v600
        %v760 = vpop.f32.mrf.mxu0
        %v761 = vadd.f32 %v547, %v760
        %v762 = vpop.f32.mrf.mxu0
        %v763 = vadd.f32 %v547, %v762
        %764 = vmatprep.mubr.f32.mxu0 0.0
        %765 = vmatmul.mubr.f32.gmra.mxu0 %v603
        %v766 = vpop.f32.mrf.mxu0
        %v767 = vadd.f32 %v552, %v766
        %v768 = vpop.f32.mrf.mxu0
        %v769 = vadd.f32 %v552, %v768
        %770 = vdwg.mxu0
        %v771 = vmul.f32 %v677, 0.5
        %v772 = vmul.f32 %v679, 0.5
        %v773 = vmul.f32 %v683, 0.5
        %v774 = vmul.f32 %v685, 0.5
        %v775 = vmul.f32 %v689, 0.5
        %v776 = vmul.f32 %v691, 0.5
        %v777 = vmul.f32 %v695, 0.5
        %v778 = vmul.f32 %v697, 0.5
        %v779 = vmul.f32 %v701, 0.5
        %v780 = vmul.f32 %v703, 0.5
        %v781 = vmul.f32 %v707, 0.5
        %v782 = vmul.f32 %v709, 0.5
        %v783 = vmul.f32 %v713, 0.5
        %v784 = vmul.f32 %v715, 0.5
        %v785 = vmul.f32 %v719, 0.5
        %v786 = vmul.f32 %v721, 0.5
        %v787 = vmul.f32 %v725, 0.5
        %v788 = vmul.f32 %v727, 0.5
        %v789 = vmul.f32 %v731, 0.5
        %v790 = vmul.f32 %v733, 0.5
        %v791 = vmul.f32 %v737, 0.5
        %v792 = vmul.f32 %v739, 0.5
        %v793 = vmul.f32 %v743, 0.5
        %v794 = vmul.f32 %v745, 0.5
        %v795 = vmul.f32 %v749, 0.5
        %v796 = vmul.f32 %v751, 0.5
        %v797 = vmul.f32 %v755, 0.5
        %v798 = vmul.f32 %v757, 0.5
        %v799 = vmul.f32 %v761, 0.5
        %v800 = vmul.f32 %v763, 0.5
        %v801 = vmul.f32 %v767, 0.5
        %v802 = vmul.f32 %v769, 0.5
        %v803 = vmul.f32 %v677, 0.70710677
        %v804 = vmul.f32 %v679, 0.70710677
        %v805 = vmul.f32 %v683, 0.70710677
        %v806 = vmul.f32 %v685, 0.70710677
        %v807 = vmul.f32 %v689, 0.70710677
        %v808 = vmul.f32 %v691, 0.70710677
        %v809 = vmul.f32 %v695, 0.70710677
        %v810 = vmul.f32 %v697, 0.70710677
        %v811 = vmul.f32 %v701, 0.70710677
        %v812 = vmul.f32 %v703, 0.70710677
        %v813 = vmul.f32 %v707, 0.70710677
        %v814 = vmul.f32 %v709, 0.70710677
        %v815 = vmul.f32 %v713, 0.70710677
        %v816 = vmul.f32 %v715, 0.70710677
        %v817 = vmul.f32 %v719, 0.70710677
        %v818 = vmul.f32 %v721, 0.70710677
        %v819 = vmul.f32 %v725, 0.70710677
        %v820 = vmul.f32 %v727, 0.70710677
        %v821 = vmul.f32 %v731, 0.70710677
        %v822 = vmul.f32 %v733, 0.70710677
        %v823 = vmul.f32 %v737, 0.70710677
        %v824 = vmul.f32 %v739, 0.70710677
        %v825 = vmul.f32 %v743, 0.70710677
        %v826 = vmul.f32 %v745, 0.70710677
        %v827 = vmul.f32 %v749, 0.70710677
        %v828 = vmul.f32 %v751, 0.70710677
        %v829 = vmul.f32 %v755, 0.70710677
        %v830 = vmul.f32 %v757, 0.70710677
        %v831 = vmul.f32 %v761, 0.70710677
        %v832 = vmul.f32 %v763, 0.70710677
        %v833 = vmul.f32 %v767, 0.70710677
        %v834 = vmul.f32 %v769, 0.70710677
        %v835 = vand.u32 2147483647, %v803
        %v836 = vand.u32 2147483647, %v804
        %v837 = vand.u32 2147483647, %v805
        %v838 = vand.u32 2147483647, %v806
        %v839 = vand.u32 2147483647, %v807
        %v840 = vand.u32 2147483647, %v808
        %v841 = vand.u32 2147483647, %v809
        %v842 = vand.u32 2147483647, %v810
        %v843 = vand.u32 2147483647, %v811
        %v844 = vand.u32 2147483647, %v812
        %v845 = vand.u32 2147483647, %v813
        %v846 = vand.u32 2147483647, %v814
        %v847 = vand.u32 2147483647, %v815
        %v848 = vand.u32 2147483647, %v816
        %v849 = vand.u32 2147483647, %v817
        %v850 = vand.u32 2147483647, %v818
        %v851 = vand.u32 2147483647, %v819
        %v852 = vand.u32 2147483647, %v820
        %v853 = vand.u32 2147483647, %v821
        %v854 = vand.u32 2147483647, %v822
        %v855 = vand.u32 2147483647, %v823
        %v856 = vand.u32 2147483647, %v824
        %v857 = vand.u32 2147483647, %v825
        %v858 = vand.u32 2147483647, %v826
        %v859 = vand.u32 2147483647, %v827
        %v860 = vand.u32 2147483647, %v828
        %v861 = vand.u32 2147483647, %v829
        %v862 = vand.u32 2147483647, %v830
        %v863 = vand.u32 2147483647, %v831
        %v864 = vand.u32 2147483647, %v832
        %v865 = vand.u32 2147483647, %v833
        %v866 = vand.u32 2147483647, %v834
        %v867 = vmul.f32 %v835, 0.3275911
        %v868 = vmul.f32 %v836, 0.3275911
        %v869 = vmul.f32 %v837, 0.3275911
        %v870 = vmul.f32 %v838, 0.3275911
        %v871 = vmul.f32 %v839, 0.3275911
        %v872 = vmul.f32 %v840, 0.3275911
        %v873 = vmul.f32 %v841, 0.3275911
        %v874 = vmul.f32 %v842, 0.3275911
        %v875 = vmul.f32 %v843, 0.3275911
        %v876 = vmul.f32 %v844, 0.3275911
        %v877 = vmul.f32 %v845, 0.3275911
        %v878 = vmul.f32 %v846, 0.3275911
        %v879 = vmul.f32 %v847, 0.3275911
        %v880 = vmul.f32 %v848, 0.3275911
        %v881 = vmul.f32 %v849, 0.3275911
        %v882 = vmul.f32 %v850, 0.3275911
        %v883 = vmul.f32 %v851, 0.3275911
        %v884 = vmul.f32 %v852, 0.3275911
        %v885 = vmul.f32 %v853, 0.3275911
        %v886 = vmul.f32 %v854, 0.3275911
        %v887 = vmul.f32 %v855, 0.3275911
        %v888 = vmul.f32 %v856, 0.3275911
        %v889 = vmul.f32 %v857, 0.3275911
        %v890 = vmul.f32 %v858, 0.3275911
        %v891 = vmul.f32 %v859, 0.3275911
        %v892 = vmul.f32 %v860, 0.3275911
        %v893 = vmul.f32 %v861, 0.3275911
        %v894 = vmul.f32 %v862, 0.3275911
        %v895 = vmul.f32 %v863, 0.3275911
        %v896 = vmul.f32 %v864, 0.3275911
        %v897 = vmul.f32 %v865, 0.3275911
        %v898 = vmul.f32 %v866, 0.3275911
        %v899 = vadd.f32 %v867, 1.0
        %v900 = vadd.f32 %v868, 1.0
        %v901 = vadd.f32 %v869, 1.0
        %v902 = vadd.f32 %v870, 1.0
        %v903 = vadd.f32 %v871, 1.0
        %v904 = vadd.f32 %v872, 1.0
        %v905 = vadd.f32 %v873, 1.0
        %v906 = vadd.f32 %v874, 1.0
        %v907 = vadd.f32 %v875, 1.0
        %v908 = vadd.f32 %v876, 1.0
        %v909 = vadd.f32 %v877, 1.0
        %v910 = vadd.f32 %v878, 1.0
        %v911 = vadd.f32 %v879, 1.0
        %v912 = vadd.f32 %v880, 1.0
        %v913 = vadd.f32 %v881, 1.0
        %v914 = vadd.f32 %v882, 1.0
        %v915 = vadd.f32 %v883, 1.0
        %v916 = vadd.f32 %v884, 1.0
        %v917 = vadd.f32 %v885, 1.0
        %v918 = vadd.f32 %v886, 1.0
        %v919 = vadd.f32 %v887, 1.0
        %v920 = vadd.f32 %v888, 1.0
        %v921 = vadd.f32 %v889, 1.0
        %v922 = vadd.f32 %v890, 1.0
        %v923 = vadd.f32 %v891, 1.0
        %v924 = vadd.f32 %v892, 1.0
        %v925 = vadd.f32 %v893, 1.0
        %v926 = vadd.f32 %v894, 1.0
        %v927 = vadd.f32 %v895, 1.0
        %v928 = vadd.f32 %v896, 1.0
        %v929 = vadd.f32 %v897, 1.0
        %v930 = vadd.f32 %v898, 1.0
        %v931 = vrcp.pop %v899
        %v932 = vmul.f32 1.0, %v931
        %v933 = vrcp.pop %v900
        %v934 = vmul.f32 1.0, %v933
        %v935 = vrcp.pop %v901
        %v936 = vmul.f32 1.0, %v935
        %v937 = vrcp.pop %v902
        %v938 = vmul.f32 1.0, %v937
        %v939 = vrcp.pop %v903
        %v940 = vmul.f32 1.0, %v939
        %v941 = vrcp.pop %v904
        %v942 = vmul.f32 1.0, %v941
        %v943 = vrcp.pop %v905
        %v944 = vmul.f32 1.0, %v943
        %v945 = vrcp.pop %v906
        %v946 = vmul.f32 1.0, %v945
        %v947 = vrcp.pop %v907
        %v948 = vmul.f32 1.0, %v947
        %v949 = vrcp.pop %v908
        %v950 = vmul.f32 1.0, %v949
        %v951 = vrcp.pop %v909
        %v952 = vmul.f32 1.0, %v951
        %v953 = vrcp.pop %v910
        %v954 = vmul.f32 1.0, %v953
        %v955 = vrcp.pop %v911
        %v956 = vmul.f32 1.0, %v955
        %v957 = vrcp.pop %v912
        %v958 = vmul.f32 1.0, %v957
        %v959 = vrcp.pop %v913
        %v960 = vmul.f32 1.0, %v959
        %v961 = vrcp.pop %v914
        %v962 = vmul.f32 1.0, %v961
        %v963 = vrcp.pop %v915
        %v964 = vmul.f32 1.0, %v963
        %v965 = vrcp.pop %v916
        %v966 = vmul.f32 1.0, %v965
        %v967 = vrcp.pop %v917
        %v968 = vmul.f32 1.0, %v967
        %v969 = vrcp.pop %v918
        %v970 = vmul.f32 1.0, %v969
        %v971 = vrcp.pop %v919
        %v972 = vmul.f32 1.0, %v971
        %v973 = vrcp.pop %v920
        %v974 = vmul.f32 1.0, %v973
        %v975 = vrcp.pop %v921
        %v976 = vmul.f32 1.0, %v975
        %v977 = vrcp.pop %v922
        %v978 = vmul.f32 1.0, %v977
        %v979 = vrcp.pop %v923
        %v980 = vmul.f32 1.0, %v979
        %v981 = vrcp.pop %v924
        %v982 = vmul.f32 1.0, %v981
        %v983 = vrcp.pop %v925
        %v984 = vmul.f32 1.0, %v983
        %v985 = vrcp.pop %v926
        %v986 = vmul.f32 1.0, %v985
        %v987 = vrcp.pop %v927
        %v988 = vmul.f32 1.0, %v987
        %v989 = vrcp.pop %v928
        %v990 = vmul.f32 1.0, %v989
        %v991 = vrcp.pop %v929
        %v992 = vmul.f32 1.0, %v991
        %v993 = vrcp.pop %v930
        %v994 = vmul.f32 1.0, %v993
        %v995 = vmul.f32 %v932, 1.0614054
        %v996 = vmul.f32 %v934, 1.0614054
        %v997 = vmul.f32 %v936, 1.0614054
        %v998 = vmul.f32 %v938, 1.0614054
        %v999 = vmul.f32 %v940, 1.0614054
        %v1000 = vmul.f32 %v942, 1.0614054
        %v1001 = vmul.f32 %v944, 1.0614054
        %v1002 = vmul.f32 %v946, 1.0614054
        %v1003 = vmul.f32 %v948, 1.0614054
        %v1004 = vmul.f32 %v950, 1.0614054
        %v1005 = vmul.f32 %v952, 1.0614054
        %v1006 = vmul.f32 %v954, 1.0614054
        %v1007 = vmul.f32 %v956, 1.0614054
        %v1008 = vmul.f32 %v958, 1.0614054
        %v1009 = vmul.f32 %v960, 1.0614054
        %v1010 = vmul.f32 %v962, 1.0614054
        %v1011 = vmul.f32 %v964, 1.0614054
        %v1012 = vmul.f32 %v966, 1.0614054
        %v1013 = vmul.f32 %v968, 1.0614054
        %v1014 = vmul.f32 %v970, 1.0614054
        %v1015 = vmul.f32 %v972, 1.0614054
        %v1016 = vmul.f32 %v974, 1.0614054
        %v1017 = vmul.f32 %v976, 1.0614054
        %v1018 = vmul.f32 %v978, 1.0614054
        %v1019 = vmul.f32 %v980, 1.0614054
        %v1020 = vmul.f32 %v982, 1.0614054
        %v1021 = vmul.f32 %v984, 1.0614054
        %v1022 = vmul.f32 %v986, 1.0614054
        %v1023 = vmul.f32 %v988, 1.0614054
        %v1024 = vmul.f32 %v990, 1.0614054
        %v1025 = vmul.f32 %v992, 1.0614054
        %v1026 = vmul.f32 %v994, 1.0614054
        %v1027 = vadd.f32 %v995, -1.4531521
        %v1028 = vadd.f32 %v996, -1.4531521
        %v1029 = vadd.f32 %v997, -1.4531521
        %v1030 = vadd.f32 %v998, -1.4531521
        %v1031 = vadd.f32 %v999, -1.4531521
        %v1032 = vadd.f32 %v1000, -1.4531521
        %v1033 = vadd.f32 %v1001, -1.4531521
        %v1034 = vadd.f32 %v1002, -1.4531521
        %v1035 = vadd.f32 %v1003, -1.4531521
        %v1036 = vadd.f32 %v1004, -1.4531521
        %v1037 = vadd.f32 %v1005, -1.4531521
        %v1038 = vadd.f32 %v1006, -1.4531521
        %v1039 = vadd.f32 %v1007, -1.4531521
        %v1040 = vadd.f32 %v1008, -1.4531521
        %v1041 = vadd.f32 %v1009, -1.4531521
        %v1042 = vadd.f32 %v1010, -1.4531521
        %v1043 = vadd.f32 %v1011, -1.4531521
        %v1044 = vadd.f32 %v1012, -1.4531521
        %v1045 = vadd.f32 %v1013, -1.4531521
        %v1046 = vadd.f32 %v1014, -1.4531521
        %v1047 = vadd.f32 %v1015, -1.4531521
        %v1048 = vadd.f32 %v1016, -1.4531521
        %v1049 = vadd.f32 %v1017, -1.4531521
        %v1050 = vadd.f32 %v1018, -1.4531521
        %v1051 = vadd.f32 %v1019, -1.4531521
        %v1052 = vadd.f32 %v1020, -1.4531521
        %v1053 = vadd.f32 %v1021, -1.4531521
        %v1054 = vadd.f32 %v1022, -1.4531521
        %v1055 = vadd.f32 %v1023, -1.4531521
        %v1056 = vadd.f32 %v1024, -1.4531521
        %v1057 = vadd.f32 %v1025, -1.4531521
        %v1058 = vadd.f32 %v1026, -1.4531521
        %v1059 = vmul.f32 %v1027, %v932
        %v1060 = vmul.f32 %v1028, %v934
        %v1061 = vmul.f32 %v1029, %v936
        %v1062 = vmul.f32 %v1030, %v938
        %v1063 = vmul.f32 %v1031, %v940
        %v1064 = vmul.f32 %v1032, %v942
        %v1065 = vmul.f32 %v1033, %v944
        %v1066 = vmul.f32 %v1034, %v946
        %v1067 = vmul.f32 %v1035, %v948
        %v1068 = vmul.f32 %v1036, %v950
        %v1069 = vmul.f32 %v1037, %v952
        %v1070 = vmul.f32 %v1038, %v954
        %v1071 = vmul.f32 %v1039, %v956
        %v1072 = vmul.f32 %v1040, %v958
        %v1073 = vmul.f32 %v1041, %v960
        %v1074 = vmul.f32 %v1042, %v962
        %v1075 = vmul.f32 %v1043, %v964
        %v1076 = vmul.f32 %v1044, %v966
        %v1077 = vmul.f32 %v1045, %v968
        %v1078 = vmul.f32 %v1046, %v970
        %v1079 = vmul.f32 %v1047, %v972
        %v1080 = vmul.f32 %v1048, %v974
        %v1081 = vmul.f32 %v1049, %v976
        %v1082 = vmul.f32 %v1050, %v978
        %v1083 = vmul.f32 %v1051, %v980
        %v1084 = vmul.f32 %v1052, %v982
        %v1085 = vmul.f32 %v1053, %v984
        %v1086 = vmul.f32 %v1054, %v986
        %v1087 = vmul.f32 %v1055, %v988
        %v1088 = vmul.f32 %v1056, %v990
        %v1089 = vmul.f32 %v1057, %v992
        %v1090 = vmul.f32 %v1058, %v994
        %v1091 = vadd.f32 %v1059, 1.4214138
        %v1092 = vadd.f32 %v1060, 1.4214138
        %v1093 = vadd.f32 %v1061, 1.4214138
        %v1094 = vadd.f32 %v1062, 1.4214138
        %v1095 = vadd.f32 %v1063, 1.4214138
        %v1096 = vadd.f32 %v1064, 1.4214138
        %v1097 = vadd.f32 %v1065, 1.4214138
        %v1098 = vadd.f32 %v1066, 1.4214138
        %v1099 = vadd.f32 %v1067, 1.4214138
        %v1100 = vadd.f32 %v1068, 1.4214138
        %v1101 = vadd.f32 %v1069, 1.4214138
        %v1102 = vadd.f32 %v1070, 1.4214138
        %v1103 = vadd.f32 %v1071, 1.4214138
        %v1104 = vadd.f32 %v1072, 1.4214138
        %v1105 = vadd.f32 %v1073, 1.4214138
        %v1106 = vadd.f32 %v1074, 1.4214138
        %v1107 = vadd.f32 %v1075, 1.4214138
        %v1108 = vadd.f32 %v1076, 1.4214138
        %v1109 = vadd.f32 %v1077, 1.4214138
        %v1110 = vadd.f32 %v1078, 1.4214138
        %v1111 = vadd.f32 %v1079, 1.4214138
        %v1112 = vadd.f32 %v1080, 1.4214138
        %v1113 = vadd.f32 %v1081, 1.4214138
        %v1114 = vadd.f32 %v1082, 1.4214138
        %v1115 = vadd.f32 %v1083, 1.4214138
        %v1116 = vadd.f32 %v1084, 1.4214138
        %v1117 = vadd.f32 %v1085, 1.4214138
        %v1118 = vadd.f32 %v1086, 1.4214138
        %v1119 = vadd.f32 %v1087, 1.4214138
        %v1120 = vadd.f32 %v1088, 1.4214138
        %v1121 = vadd.f32 %v1089, 1.4214138
        %v1122 = vadd.f32 %v1090, 1.4214138
        %v1123 = vmul.f32 %v1091, %v932
        %v1124 = vmul.f32 %v1092, %v934
        %v1125 = vmul.f32 %v1093, %v936
        %v1126 = vmul.f32 %v1094, %v938
        %v1127 = vmul.f32 %v1095, %v940
        %v1128 = vmul.f32 %v1096, %v942
        %v1129 = vmul.f32 %v1097, %v944
        %v1130 = vmul.f32 %v1098, %v946
        %v1131 = vmul.f32 %v1099, %v948
        %v1132 = vmul.f32 %v1100, %v950
        %v1133 = vmul.f32 %v1101, %v952
        %v1134 = vmul.f32 %v1102, %v954
        %v1135 = vmul.f32 %v1103, %v956
        %v1136 = vmul.f32 %v1104, %v958
        %v1137 = vmul.f32 %v1105, %v960
        %v1138 = vmul.f32 %v1106, %v962
        %v1139 = vmul.f32 %v1107, %v964
        %v1140 = vmul.f32 %v1108, %v966
        %v1141 = vmul.f32 %v1109, %v968
        %v1142 = vmul.f32 %v1110, %v970
        %v1143 = vmul.f32 %v1111, %v972
        %v1144 = vmul.f32 %v1112, %v974
        %v1145 = vmul.f32 %v1113, %v976
        %v1146 = vmul.f32 %v1114, %v978
        %v1147 = vmul.f32 %v1115, %v980
        %v1148 = vmul.f32 %v1116, %v982
        %v1149 = vmul.f32 %v1117, %v984
        %v1150 = vmul.f32 %v1118, %v986
        %v1151 = vmul.f32 %v1119, %v988
        %v1152 = vmul.f32 %v1120, %v990
        %v1153 = vmul.f32 %v1121, %v992
        %v1154 = vmul.f32 %v1122, %v994
        %v1155 = vadd.f32 %v1123, -0.28449672
        %v1156 = vadd.f32 %v1124, -0.28449672
        %v1157 = vadd.f32 %v1125, -0.28449672
        %v1158 = vadd.f32 %v1126, -0.28449672
        %v1159 = vadd.f32 %v1127, -0.28449672
        %v1160 = vadd.f32 %v1128, -0.28449672
        %v1161 = vadd.f32 %v1129, -0.28449672
        %v1162 = vadd.f32 %v1130, -0.28449672
        %v1163 = vadd.f32 %v1131, -0.28449672
        %v1164 = vadd.f32 %v1132, -0.28449672
        %v1165 = vadd.f32 %v1133, -0.28449672
        %v1166 = vadd.f32 %v1134, -0.28449672
        %v1167 = vadd.f32 %v1135, -0.28449672
        %v1168 = vadd.f32 %v1136, -0.28449672
        %v1169 = vadd.f32 %v1137, -0.28449672
        %v1170 = vadd.f32 %v1138, -0.28449672
        %v1171 = vadd.f32 %v1139, -0.28449672
        %v1172 = vadd.f32 %v1140, -0.28449672
        %v1173 = vadd.f32 %v1141, -0.28449672
        %v1174 = vadd.f32 %v1142, -0.28449672
        %v1175 = vadd.f32 %v1143, -0.28449672
        %v1176 = vadd.f32 %v1144, -0.28449672
        %v1177 = vadd.f32 %v1145, -0.28449672
        %v1178 = vadd.f32 %v1146, -0.28449672
        %v1179 = vadd.f32 %v1147, -0.28449672
        %v1180 = vadd.f32 %v1148, -0.28449672
        %v1181 = vadd.f32 %v1149, -0.28449672
        %v1182 = vadd.f32 %v1150, -0.28449672
        %v1183 = vadd.f32 %v1151, -0.28449672
        %v1184 = vadd.f32 %v1152, -0.28449672
        %v1185 = vadd.f32 %v1153, -0.28449672
        %v1186 = vadd.f32 %v1154, -0.28449672
        %v1187 = vmul.f32 %v1155, %v932
        %v1188 = vmul.f32 %v1156, %v934
        %v1189 = vmul.f32 %v1157, %v936
        %v1190 = vmul.f32 %v1158, %v938
        %v1191 = vmul.f32 %v1159, %v940
        %v1192 = vmul.f32 %v1160, %v942
        %v1193 = vmul.f32 %v1161, %v944
        %v1194 = vmul.f32 %v1162, %v946
        %v1195 = vmul.f32 %v1163, %v948
        %v1196 = vmul.f32 %v1164, %v950
        %v1197 = vmul.f32 %v1165, %v952
        %v1198 = vmul.f32 %v1166, %v954
        %v1199 = vmul.f32 %v1167, %v956
        %v1200 = vmul.f32 %v1168, %v958
        %v1201 = vmul.f32 %v1169, %v960
        %v1202 = vmul.f32 %v1170, %v962
        %v1203 = vmul.f32 %v1171, %v964
        %v1204 = vmul.f32 %v1172, %v966
        %v1205 = vmul.f32 %v1173, %v968
        %v1206 = vmul.f32 %v1174, %v970
        %v1207 = vmul.f32 %v1175, %v972
        %v1208 = vmul.f32 %v1176, %v974
        %v1209 = vmul.f32 %v1177, %v976
        %v1210 = vmul.f32 %v1178, %v978
        %v1211 = vmul.f32 %v1179, %v980
        %v1212 = vmul.f32 %v1180, %v982
        %v1213 = vmul.f32 %v1181, %v984
        %v1214 = vmul.f32 %v1182, %v986
        %v1215 = vmul.f32 %v1183, %v988
        %v1216 = vmul.f32 %v1184, %v990
        %v1217 = vmul.f32 %v1185, %v992
        %v1218 = vmul.f32 %v1186, %v994
        %v1219 = vadd.f32 %v1187, 0.2548296
        %v1220 = vadd.f32 %v1188, 0.2548296
        %v1221 = vadd.f32 %v1189, 0.2548296
        %v1222 = vadd.f32 %v1190, 0.2548296
        %v1223 = vadd.f32 %v1191, 0.2548296
        %v1224 = vadd.f32 %v1192, 0.2548296
        %v1225 = vadd.f32 %v1193, 0.2548296
        %v1226 = vadd.f32 %v1194, 0.2548296
        %v1227 = vadd.f32 %v1195, 0.2548296
        %v1228 = vadd.f32 %v1196, 0.2548296
        %v1229 = vadd.f32 %v1197, 0.2548296
        %v1230 = vadd.f32 %v1198, 0.2548296
        %v1231 = vadd.f32 %v1199, 0.2548296
        %v1232 = vadd.f32 %v1200, 0.2548296
        %v1233 = vadd.f32 %v1201, 0.2548296
        %v1234 = vadd.f32 %v1202, 0.2548296
        %v1235 = vadd.f32 %v1203, 0.2548296
        %v1236 = vadd.f32 %v1204, 0.2548296
        %v1237 = vadd.f32 %v1205, 0.2548296
        %v1238 = vadd.f32 %v1206, 0.2548296
        %v1239 = vadd.f32 %v1207, 0.2548296
        %v1240 = vadd.f32 %v1208, 0.2548296
        %v1241 = vadd.f32 %v1209, 0.2548296
        %v1242 = vadd.f32 %v1210, 0.2548296
        %v1243 = vadd.f32 %v1211, 0.2548296
        %v1244 = vadd.f32 %v1212, 0.2548296
        %v1245 = vadd.f32 %v1213, 0.2548296
        %v1246 = vadd.f32 %v1214, 0.2548296
        %v1247 = vadd.f32 %v1215, 0.2548296
        %v1248 = vadd.f32 %v1216, 0.2548296
        %v1249 = vadd.f32 %v1217, 0.2548296
        %v1250 = vadd.f32 %v1218, 0.2548296
        %v1251 = vmul.f32 %v1219, %v932
        %v1252 = vmul.f32 %v1220, %v934
        %v1253 = vmul.f32 %v1221, %v936
        %v1254 = vmul.f32 %v1222, %v938
        %v1255 = vmul.f32 %v1223, %v940
        %v1256 = vmul.f32 %v1224, %v942
        %v1257 = vmul.f32 %v1225, %v944
        %v1258 = vmul.f32 %v1226, %v946
        %v1259 = vmul.f32 %v1227, %v948
        %v1260 = vmul.f32 %v1228, %v950
        %v1261 = vmul.f32 %v1229, %v952
        %v1262 = vmul.f32 %v1230, %v954
        %v1263 = vmul.f32 %v1231, %v956
        %v1264 = vmul.f32 %v1232, %v958
        %v1265 = vmul.f32 %v1233, %v960
        %v1266 = vmul.f32 %v1234, %v962
        %v1267 = vmul.f32 %v1235, %v964
        %v1268 = vmul.f32 %v1236, %v966
        %v1269 = vmul.f32 %v1237, %v968
        %v1270 = vmul.f32 %v1238, %v970
        %v1271 = vmul.f32 %v1239, %v972
        %v1272 = vmul.f32 %v1240, %v974
        %v1273 = vmul.f32 %v1241, %v976
        %v1274 = vmul.f32 %v1242, %v978
        %v1275 = vmul.f32 %v1243, %v980
        %v1276 = vmul.f32 %v1244, %v982
        %v1277 = vmul.f32 %v1245, %v984
        %v1278 = vmul.f32 %v1246, %v986
        %v1279 = vmul.f32 %v1247, %v988
        %v1280 = vmul.f32 %v1248, %v990
        %v1281 = vmul.f32 %v1249, %v992
        %v1282 = vmul.f32 %v1250, %v994
        %v1283 = vsub.f32 0.0, %v835
        %v1284 = vsub.f32 0.0, %v836
        %v1285 = vsub.f32 0.0, %v837
        %v1286 = vsub.f32 0.0, %v838
        %v1287 = vsub.f32 0.0, %v839
        %v1288 = vsub.f32 0.0, %v840
        %v1289 = vsub.f32 0.0, %v841
        %v1290 = vsub.f32 0.0, %v842
        %v1291 = vsub.f32 0.0, %v843
        %v1292 = vsub.f32 0.0, %v844
        %v1293 = vsub.f32 0.0, %v845
        %v1294 = vsub.f32 0.0, %v846
        %v1295 = vsub.f32 0.0, %v847
        %v1296 = vsub.f32 0.0, %v848
        %v1297 = vsub.f32 0.0, %v849
        %v1298 = vsub.f32 0.0, %v850
        %v1299 = vsub.f32 0.0, %v851
        %v1300 = vsub.f32 0.0, %v852
        %v1301 = vsub.f32 0.0, %v853
        %v1302 = vsub.f32 0.0, %v854
        %v1303 = vsub.f32 0.0, %v855
        %v1304 = vsub.f32 0.0, %v856
        %v1305 = vsub.f32 0.0, %v857
        %v1306 = vsub.f32 0.0, %v858
        %v1307 = vsub.f32 0.0, %v859
        %v1308 = vsub.f32 0.0, %v860
        %v1309 = vsub.f32 0.0, %v861
        %v1310 = vsub.f32 0.0, %v862
        %v1311 = vsub.f32 0.0, %v863
        %v1312 = vsub.f32 0.0, %v864
        %v1313 = vsub.f32 0.0, %v865
        %v1314 = vsub.f32 0.0, %v866
        %v1315 = vmul.f32 %v1283, %v835
        %v1316 = vmul.f32 %v1284, %v836
        %v1317 = vmul.f32 %v1285, %v837
        %v1318 = vmul.f32 %v1286, %v838
        %v1319 = vmul.f32 %v1287, %v839
        %v1320 = vmul.f32 %v1288, %v840
        %v1321 = vmul.f32 %v1289, %v841
        %v1322 = vmul.f32 %v1290, %v842
        %v1323 = vmul.f32 %v1291, %v843
        %v1324 = vmul.f32 %v1292, %v844
        %v1325 = vmul.f32 %v1293, %v845
        %v1326 = vmul.f32 %v1294, %v846
        %v1327 = vmul.f32 %v1295, %v847
        %v1328 = vmul.f32 %v1296, %v848
        %v1329 = vmul.f32 %v1297, %v849
        %v1330 = vmul.f32 %v1298, %v850
        %v1331 = vmul.f32 %v1299, %v851
        %v1332 = vmul.f32 %v1300, %v852
        %v1333 = vmul.f32 %v1301, %v853
        %v1334 = vmul.f32 %v1302, %v854
        %v1335 = vmul.f32 %v1303, %v855
        %v1336 = vmul.f32 %v1304, %v856
        %v1337 = vmul.f32 %v1305, %v857
        %v1338 = vmul.f32 %v1306, %v858
        %v1339 = vmul.f32 %v1307, %v859
        %v1340 = vmul.f32 %v1308, %v860
        %v1341 = vmul.f32 %v1309, %v861
        %v1342 = vmul.f32 %v1310, %v862
        %v1343 = vmul.f32 %v1311, %v863
        %v1344 = vmul.f32 %v1312, %v864
        %v1345 = vmul.f32 %v1313, %v865
        %v1346 = vmul.f32 %v1314, %v866
        %v1347 = vmul.f32 %v1315, 1.442695
        %v1348 = vpow.pop %v1347
        %v1349 = vmul.f32 %v1316, 1.442695
        %v1350 = vpow.pop %v1349
        %v1351 = vmul.f32 %v1317, 1.442695
        %v1352 = vpow.pop %v1351
        %v1353 = vmul.f32 %v1318, 1.442695
        %v1354 = vpow.pop %v1353
        %v1355 = vmul.f32 %v1319, 1.442695
        %v1356 = vpow.pop %v1355
        %v1357 = vmul.f32 %v1320, 1.442695
        %v1358 = vpow.pop %v1357
        %v1359 = vmul.f32 %v1321, 1.442695
        %v1360 = vpow.pop %v1359
        %v1361 = vmul.f32 %v1322, 1.442695
        %v1362 = vpow.pop %v1361
        %v1363 = vmul.f32 %v1323, 1.442695
        %v1364 = vpow.pop %v1363
        %v1365 = vmul.f32 %v1324, 1.442695
        %v1366 = vpow.pop %v1365
        %v1367 = vmul.f32 %v1325, 1.442695
        %v1368 = vpow.pop %v1367
        %v1369 = vmul.f32 %v1326, 1.442695
        %v1370 = vpow.pop %v1369
        %v1371 = vmul.f32 %v1327, 1.442695
        %v1372 = vpow.pop %v1371
        %v1373 = vmul.f32 %v1328, 1.442695
        %v1374 = vpow.pop %v1373
        %v1375 = vmul.f32 %v1329, 1.442695
        %v1376 = vpow.pop %v1375
        %v1377 = vmul.f32 %v1330, 1.442695
        %v1378 = vpow.pop %v1377
        %v1379 = vmul.f32 %v1331, 1.442695
        %v1380 = vpow.pop %v1379
        %v1381 = vmul.f32 %v1332, 1.442695
        %v1382 = vpow.pop %v1381
        %v1383 = vmul.f32 %v1333, 1.442695
        %v1384 = vpow.pop %v1383
        %v1385 = vmul.f32 %v1334, 1.442695
        %v1386 = vpow.pop %v1385
        %v1387 = vmul.f32 %v1335, 1.442695
        %v1388 = vpow.pop %v1387
        %v1389 = vmul.f32 %v1336, 1.442695
        %v1390 = vpow.pop %v1389
        %v1391 = vmul.f32 %v1337, 1.442695
        %v1392 = vpow.pop %v1391
        %v1393 = vmul.f32 %v1338, 1.442695
        %v1394 = vpow.pop %v1393
        %v1395 = vmul.f32 %v1339, 1.442695
        %v1396 = vpow.pop %v1395
        %v1397 = vmul.f32 %v1340, 1.442695
        %v1398 = vpow.pop %v1397
        %v1399 = vmul.f32 %v1341, 1.442695
        %v1400 = vpow.pop %v1399
        %v1401 = vmul.f32 %v1342, 1.442695
        %v1402 = vpow.pop %v1401
        %v1403 = vmul.f32 %v1343, 1.442695
        %v1404 = vpow.pop %v1403
        %v1405 = vmul.f32 %v1344, 1.442695
        %v1406 = vpow.pop %v1405
        %v1407 = vmul.f32 %v1345, 1.442695
        %v1408 = vpow.pop %v1407
        %v1409 = vmul.f32 %v1346, 1.442695
        %v1410 = vpow.pop %v1409
        %v1411 = vmul.f32 %v1251, %v1348
        %v1412 = vmul.f32 %v1252, %v1350
        %v1413 = vmul.f32 %v1253, %v1352
        %v1414 = vmul.f32 %v1254, %v1354
        %v1415 = vmul.f32 %v1255, %v1356
        %v1416 = vmul.f32 %v1256, %v1358
        %v1417 = vmul.f32 %v1257, %v1360
        %v1418 = vmul.f32 %v1258, %v1362
        %v1419 = vmul.f32 %v1259, %v1364
        %v1420 = vmul.f32 %v1260, %v1366
        %v1421 = vmul.f32 %v1261, %v1368
        %v1422 = vmul.f32 %v1262, %v1370
        %v1423 = vmul.f32 %v1263, %v1372
        %v1424 = vmul.f32 %v1264, %v1374
        %v1425 = vmul.f32 %v1265, %v1376
        %v1426 = vmul.f32 %v1266, %v1378
        %v1427 = vmul.f32 %v1267, %v1380
        %v1428 = vmul.f32 %v1268, %v1382
        %v1429 = vmul.f32 %v1269, %v1384
        %v1430 = vmul.f32 %v1270, %v1386
        %v1431 = vmul.f32 %v1271, %v1388
        %v1432 = vmul.f32 %v1272, %v1390
        %v1433 = vmul.f32 %v1273, %v1392
        %v1434 = vmul.f32 %v1274, %v1394
        %v1435 = vmul.f32 %v1275, %v1396
        %v1436 = vmul.f32 %v1276, %v1398
        %v1437 = vmul.f32 %v1277, %v1400
        %v1438 = vmul.f32 %v1278, %v1402
        %v1439 = vmul.f32 %v1279, %v1404
        %v1440 = vmul.f32 %v1280, %v1406
        %v1441 = vmul.f32 %v1281, %v1408
        %v1442 = vmul.f32 %v1282, %v1410
        %v1443 = vsub.f32 1.0, %v1411
        %v1444 = vsub.f32 1.0, %v1412
        %v1445 = vsub.f32 1.0, %v1413
        %v1446 = vsub.f32 1.0, %v1414
        %v1447 = vsub.f32 1.0, %v1415
        %v1448 = vsub.f32 1.0, %v1416
        %v1449 = vsub.f32 1.0, %v1417
        %v1450 = vsub.f32 1.0, %v1418
        %v1451 = vsub.f32 1.0, %v1419
        %v1452 = vsub.f32 1.0, %v1420
        %v1453 = vsub.f32 1.0, %v1421
        %v1454 = vsub.f32 1.0, %v1422
        %v1455 = vsub.f32 1.0, %v1423
        %v1456 = vsub.f32 1.0, %v1424
        %v1457 = vsub.f32 1.0, %v1425
        %v1458 = vsub.f32 1.0, %v1426
        %v1459 = vsub.f32 1.0, %v1427
        %v1460 = vsub.f32 1.0, %v1428
        %v1461 = vsub.f32 1.0, %v1429
        %v1462 = vsub.f32 1.0, %v1430
        %v1463 = vsub.f32 1.0, %v1431
        %v1464 = vsub.f32 1.0, %v1432
        %v1465 = vsub.f32 1.0, %v1433
        %v1466 = vsub.f32 1.0, %v1434
        %v1467 = vsub.f32 1.0, %v1435
        %v1468 = vsub.f32 1.0, %v1436
        %v1469 = vsub.f32 1.0, %v1437
        %v1470 = vsub.f32 1.0, %v1438
        %v1471 = vsub.f32 1.0, %v1439
        %v1472 = vsub.f32 1.0, %v1440
        %v1473 = vsub.f32 1.0, %v1441
        %v1474 = vsub.f32 1.0, %v1442
        %vm1475 = vcmp.lt.f32.partialorder %v803, 0.0
        %vm1476 = vcmp.lt.f32.partialorder %v804, 0.0
        %vm1477 = vcmp.lt.f32.partialorder %v805, 0.0
        %vm1478 = vcmp.lt.f32.partialorder %v806, 0.0
        %vm1479 = vcmp.lt.f32.partialorder %v807, 0.0
        %vm1480 = vcmp.lt.f32.partialorder %v808, 0.0
        %vm1481 = vcmp.lt.f32.partialorder %v809, 0.0
        %vm1482 = vcmp.lt.f32.partialorder %v810, 0.0
        %vm1483 = vcmp.lt.f32.partialorder %v811, 0.0
        %vm1484 = vcmp.lt.f32.partialorder %v812, 0.0
        %vm1485 = vcmp.lt.f32.partialorder %v813, 0.0
        %vm1486 = vcmp.lt.f32.partialorder %v814, 0.0
        %vm1487 = vcmp.lt.f32.partialorder %v815, 0.0
        %vm1488 = vcmp.lt.f32.partialorder %v816, 0.0
        %vm1489 = vcmp.lt.f32.partialorder %v817, 0.0
        %vm1490 = vcmp.lt.f32.partialorder %v818, 0.0
        %vm1491 = vcmp.lt.f32.partialorder %v819, 0.0
        %vm1492 = vcmp.lt.f32.partialorder %v820, 0.0
        %vm1493 = vcmp.lt.f32.partialorder %v821, 0.0
        %vm1494 = vcmp.lt.f32.partialorder %v822, 0.0
        %vm1495 = vcmp.lt.f32.partialorder %v823, 0.0
        %vm1496 = vcmp.lt.f32.partialorder %v824, 0.0
        %vm1497 = vcmp.lt.f32.partialorder %v825, 0.0
        %vm1498 = vcmp.lt.f32.partialorder %v826, 0.0
        %vm1499 = vcmp.lt.f32.partialorder %v827, 0.0
        %vm1500 = vcmp.lt.f32.partialorder %v828, 0.0
        %vm1501 = vcmp.lt.f32.partialorder %v829, 0.0
        %vm1502 = vcmp.lt.f32.partialorder %v830, 0.0
        %vm1503 = vcmp.lt.f32.partialorder %v831, 0.0
        %vm1504 = vcmp.lt.f32.partialorder %v832, 0.0
        %vm1505 = vcmp.lt.f32.partialorder %v833, 0.0
        %vm1506 = vcmp.lt.f32.partialorder %v834, 0.0
        %v1507 = vsub.f32 0.0, %v1443
        %v1508 = vsub.f32 0.0, %v1444
        %v1509 = vsub.f32 0.0, %v1445
        %v1510 = vsub.f32 0.0, %v1446
        %v1511 = vsub.f32 0.0, %v1447
        %v1512 = vsub.f32 0.0, %v1448
        %v1513 = vsub.f32 0.0, %v1449
        %v1514 = vsub.f32 0.0, %v1450
        %v1515 = vsub.f32 0.0, %v1451
        %v1516 = vsub.f32 0.0, %v1452
        %v1517 = vsub.f32 0.0, %v1453
        %v1518 = vsub.f32 0.0, %v1454
        %v1519 = vsub.f32 0.0, %v1455
        %v1520 = vsub.f32 0.0, %v1456
        %v1521 = vsub.f32 0.0, %v1457
        %v1522 = vsub.f32 0.0, %v1458
        %v1523 = vsub.f32 0.0, %v1459
        %v1524 = vsub.f32 0.0, %v1460
        %v1525 = vsub.f32 0.0, %v1461
        %v1526 = vsub.f32 0.0, %v1462
        %v1527 = vsub.f32 0.0, %v1463
        %v1528 = vsub.f32 0.0, %v1464
        %v1529 = vsub.f32 0.0, %v1465
        %v1530 = vsub.f32 0.0, %v1466
        %v1531 = vsub.f32 0.0, %v1467
        %v1532 = vsub.f32 0.0, %v1468
        %v1533 = vsub.f32 0.0, %v1469
        %v1534 = vsub.f32 0.0, %v1470
        %v1535 = vsub.f32 0.0, %v1471
        %v1536 = vsub.f32 0.0, %v1472
        %v1537 = vsub.f32 0.0, %v1473
        %v1538 = vsub.f32 0.0, %v1474
        %v1539 = vsel %vm1475, %v1507, %v1443
        %v1540 = vsel %vm1476, %v1508, %v1444
        %v1541 = vsel %vm1477, %v1509, %v1445
        %v1542 = vsel %vm1478, %v1510, %v1446
        %v1543 = vsel %vm1479, %v1511, %v1447
        %v1544 = vsel %vm1480, %v1512, %v1448
        %v1545 = vsel %vm1481, %v1513, %v1449
        %v1546 = vsel %vm1482, %v1514, %v1450
        %v1547 = vsel %vm1483, %v1515, %v1451
        %v1548 = vsel %vm1484, %v1516, %v1452
        %v1549 = vsel %vm1485, %v1517, %v1453
        %v1550 = vsel %vm1486, %v1518, %v1454
        %v1551 = vsel %vm1487, %v1519, %v1455
        %v1552 = vsel %vm1488, %v1520, %v1456
        %v1553 = vsel %vm1489, %v1521, %v1457
        %v1554 = vsel %vm1490, %v1522, %v1458
        %v1555 = vsel %vm1491, %v1523, %v1459
        %v1556 = vsel %vm1492, %v1524, %v1460
        %v1557 = vsel %vm1493, %v1525, %v1461
        %v1558 = vsel %vm1494, %v1526, %v1462
        %v1559 = vsel %vm1495, %v1527, %v1463
        %v1560 = vsel %vm1496, %v1528, %v1464
        %v1561 = vsel %vm1497, %v1529, %v1465
        %v1562 = vsel %vm1498, %v1530, %v1466
        %v1563 = vsel %vm1499, %v1531, %v1467
        %v1564 = vsel %vm1500, %v1532, %v1468
        %v1565 = vsel %vm1501, %v1533, %v1469
        %v1566 = vsel %vm1502, %v1534, %v1470
        %v1567 = vsel %vm1503, %v1535, %v1471
        %v1568 = vsel %vm1504, %v1536, %v1472
        %v1569 = vsel %vm1505, %v1537, %v1473
        %v1570 = vsel %vm1506, %v1538, %v1474
        %v1571 = vadd.f32 %v1539, 1.0
        %v1572 = vadd.f32 %v1540, 1.0
        %v1573 = vadd.f32 %v1541, 1.0
        %v1574 = vadd.f32 %v1542, 1.0
        %v1575 = vadd.f32 %v1543, 1.0
        %v1576 = vadd.f32 %v1544, 1.0
        %v1577 = vadd.f32 %v1545, 1.0
        %v1578 = vadd.f32 %v1546, 1.0
        %v1579 = vadd.f32 %v1547, 1.0
        %v1580 = vadd.f32 %v1548, 1.0
        %v1581 = vadd.f32 %v1549, 1.0
        %v1582 = vadd.f32 %v1550, 1.0
        %v1583 = vadd.f32 %v1551, 1.0
        %v1584 = vadd.f32 %v1552, 1.0
        %v1585 = vadd.f32 %v1553, 1.0
        %v1586 = vadd.f32 %v1554, 1.0
        %v1587 = vadd.f32 %v1555, 1.0
        %v1588 = vadd.f32 %v1556, 1.0
        %v1589 = vadd.f32 %v1557, 1.0
        %v1590 = vadd.f32 %v1558, 1.0
        %v1591 = vadd.f32 %v1559, 1.0
        %v1592 = vadd.f32 %v1560, 1.0
        %v1593 = vadd.f32 %v1561, 1.0
        %v1594 = vadd.f32 %v1562, 1.0
        %v1595 = vadd.f32 %v1563, 1.0
        %v1596 = vadd.f32 %v1564, 1.0
        %v1597 = vadd.f32 %v1565, 1.0
        %v1598 = vadd.f32 %v1566, 1.0
        %v1599 = vadd.f32 %v1567, 1.0
        %v1600 = vadd.f32 %v1568, 1.0
        %v1601 = vadd.f32 %v1569, 1.0
        %v1602 = vadd.f32 %v1570, 1.0
        %v1603 = vmul.f32 %v771, %v1571
        %v1604 = vmul.f32 %v772, %v1572
        %v1605 = vmul.f32 %v773, %v1573
        %v1606 = vmul.f32 %v774, %v1574
        %v1607 = vmul.f32 %v775, %v1575
        %v1608 = vmul.f32 %v776, %v1576
        %v1609 = vmul.f32 %v777, %v1577
        %v1610 = vmul.f32 %v778, %v1578
        %v1611 = vmul.f32 %v779, %v1579
        %v1612 = vmul.f32 %v780, %v1580
        %v1613 = vmul.f32 %v781, %v1581
        %v1614 = vmul.f32 %v782, %v1582
        %v1615 = vmul.f32 %v783, %v1583
        %v1616 = vmul.f32 %v784, %v1584
        %v1617 = vmul.f32 %v785, %v1585
        %v1618 = vmul.f32 %v786, %v1586
        %v1619 = vmul.f32 %v787, %v1587
        %v1620 = vmul.f32 %v788, %v1588
        %v1621 = vmul.f32 %v789, %v1589
        %v1622 = vmul.f32 %v790, %v1590
        %v1623 = vmul.f32 %v791, %v1591
        %v1624 = vmul.f32 %v792, %v1592
        %v1625 = vmul.f32 %v793, %v1593
        %v1626 = vmul.f32 %v794, %v1594
        %v1627 = vmul.f32 %v795, %v1595
        %v1628 = vmul.f32 %v796, %v1596
        %v1629 = vmul.f32 %v797, %v1597
        %v1630 = vmul.f32 %v798, %v1598
        %v1631 = vmul.f32 %v799, %v1599
        %v1632 = vmul.f32 %v800, %v1600
        %v1633 = vmul.f32 %v801, %v1601
        %v1634 = vmul.f32 %v802, %v1602
        %v1635 = vld [vmem:[%s4] sm:$0xff]
        %v1636 = vld [vmem:[%s4 + $0x8] sm:$0xff]
        %v1637 = vld [vmem:[%s5] sm:$0xff]
        %v1638 = vld [vmem:[%s5 + $0x8] sm:$0xff]
        %1640 = vset.pattern.permute.xlu0 0
        %1641 = vperm.xlu0 %1640, %v1637
        %v1642 = vpop.permute.xlu0 %1641
        %1645 = vset.pattern.permute.xlu0 0
        %1646 = vperm.xlu0 %1645, %v1638
        %v1647 = vpop.permute.xlu0 %1646
        %1649 = vmatprep.subr.mxu0 %v1634
        %1650 = vmatpush1.msra.mxu0 %v1633
        %1651 = vmatprep.subr.mxu0 %v1632
        %1652 = vmatpush1.msra.mxu0 %v1631
        %1653 = vmatprep.subr.mxu0 %v1630
        %1654 = vmatpush1.msra.mxu0 %v1629
        %1655 = vmatprep.subr.mxu0 %v1628
        %1656 = vmatpush1.msra.mxu0 %v1627
        %1657 = vmatprep.subr.mxu0 %v1626
        %1658 = vmatpush1.msra.mxu0 %v1625
        %1659 = vmatprep.subr.mxu0 %v1624
        %1660 = vmatpush1.msra.mxu0 %v1623
        %1661 = vmatprep.subr.mxu0 %v1622
        %1662 = vmatpush1.msra.mxu0 %v1621
        %1663 = vmatprep.subr.mxu0 %v1620
        %1664 = vmatpush1.msra.mxu0 %v1619
        %1665 = vmatprep.subr.mxu0 %v1618
        %1666 = vmatpush1.msra.mxu0 %v1617
        %1667 = vmatprep.subr.mxu0 %v1616
        %1668 = vmatpush1.msra.mxu0 %v1615
        %1669 = vmatprep.subr.mxu0 %v1614
        %1670 = vmatpush1.msra.mxu0 %v1613
        %1671 = vmatprep.subr.mxu0 %v1612
        %1672 = vmatpush1.msra.mxu0 %v1611
        %1673 = vmatprep.subr.mxu0 %v1610
        %1674 = vmatpush1.msra.mxu0 %v1609
        %1675 = vmatprep.subr.mxu0 %v1608
        %1676 = vmatpush1.msra.mxu0 %v1607
        %1677 = vmatprep.subr.mxu0 %v1606
        %1678 = vmatpush1.msra.mxu0 %v1605
        %1679 = vmatprep.subr.mxu0 %v1604
        %1680 = vmatpush1.msra.mxu0 %v1603
        %1681 = vmatprep.subr.mxu0 0.0
        %1682 = vmatpush2.msra.mxu0 0.0
        %1683 = vmatprep.subr.mxu0 0.0
        %1684 = vmatpush2.msra.mxu0 0.0
        %1685 = vmatprep.subr.mxu0 0.0
        %1686 = vmatpush2.msra.mxu0 0.0
        %1687 = vmatprep.subr.mxu0 0.0
        %1688 = vmatpush2.msra.mxu0 0.0
        %1689 = vmatprep.subr.mxu0 0.0
        %1690 = vmatpush2.msra.mxu0 0.0
        %1691 = vmatprep.subr.mxu0 0.0
        %1692 = vmatpush2.msra.mxu0 0.0
        %1693 = vmatprep.subr.mxu0 0.0
        %1694 = vmatpush2.msra.mxu0 0.0
        %1695 = vmatprep.subr.mxu0 0.0
        %1696 = vmatpush2.msra.mxu0 0.0
        %1697 = vmatprep.subr.mxu0 0.0
        %1698 = vmatpush2.msra.mxu0 0.0
        %1699 = vmatprep.subr.mxu0 0.0
        %1700 = vmatpush2.msra.mxu0 0.0
        %1701 = vmatprep.subr.mxu0 0.0
        %1702 = vmatpush2.msra.mxu0 0.0
        %1703 = vmatprep.subr.mxu0 0.0
        %1704 = vmatpush2.msra.mxu0 0.0
        %1705 = vmatprep.subr.mxu0 0.0
        %1706 = vmatpush2.msra.mxu0 0.0
        %1707 = vmatprep.subr.mxu0 0.0
        %1708 = vmatpush2.msra.mxu0 0.0
        %1709 = vmatprep.subr.mxu0 0.0
        %1710 = vmatpush2.msra.mxu0 0.0
        %1711 = vmatprep.subr.mxu0 0.0
        %1712 = vmatpush2.msra.mxu0 0.0
        %1713 = vmatprep.mubr.f32.mxu0 0.0
        %1714 = vmatmul.mubr.f32.gmra.mxu0 %v1635
        %v1715 = vpop.f32.mrf.mxu0
        %v1716 = vadd.f32 %v1642, %v1715
        %v1717 = vpop.f32.mrf.mxu0
        %v1718 = vadd.f32 %v1642, %v1717
        %1719 = vmatprep.mubr.f32.mxu0 0.0
        %1720 = vmatmul.mubr.f32.gmra.mxu0 %v1636
        %v1721 = vpop.f32.mrf.mxu0
        %v1722 = vadd.f32 %v1647, %v1721
        %v1723 = vpop.f32.mrf.mxu0
        %v1724 = vadd.f32 %v1647, %v1723
        %1725 = vdwg.mxu0
        %v1726 = vmax.f32 %v1716, 0.0
        %v1727 = vmax.f32 %v1718, 0.0
        %v1728 = vmax.f32 %v1722, 0.0
        %v1729 = vmax.f32 %v1724, 0.0
        %v1730 = vadd.f32 %v1726, 0.001
        %v1731 = vadd.f32 %v1727, 0.001
        %v1732 = vadd.f32 %v1728, 0.001
        %v1733 = vadd.f32 %v1729, 0.001
        %v1734 = vrot.slane %v440, 4
        %v1735 = vadd.f32 %v440, %v1734
        %v1736 = vrot.slane %v1735, 2
        %v1737 = vadd.f32 %v1735, %v1736
        %v1738 = vrot.slane %v1737, 1
        %v1739 = vadd.f32 %v1737, %v1738
        %v1740 = vrot.slane %v441, 4
        %v1741 = vadd.f32 %v441, %v1740
        %v1742 = vrot.slane %v1741, 2
        %v1743 = vadd.f32 %v1741, %v1742
        %v1744 = vrot.slane %v1743, 1
        %v1745 = vadd.f32 %v1743, %v1744
        %v1746 = vld [vmem:[%s6] sm:$0xff]
        %vm1747 = vcmask 130048
        %v1749 = vsel %vm1747, %v1746, 0
        %1751 = vmatprep.subr.mxu0 0.0
        %1752 = vmatpush1.msra.mxu0 0.0
        %1753 = vmatprep.subr.mxu0 0.0
        %1754 = vmatpush1.msra.mxu0 0.0
        %1755 = vmatprep.subr.mxu0 0.0
        %1756 = vmatpush1.msra.mxu0 0.0
        %1757 = vmatprep.subr.mxu0 0.0
        %1758 = vmatpush1.msra.mxu0 0.0
        %1759 = vmatprep.subr.mxu0 0.0
        %1760 = vmatpush1.msra.mxu0 0.0
        %1761 = vmatprep.subr.mxu0 0.0
        %1762 = vmatpush1.msra.mxu0 0.0
        %1763 = vmatprep.subr.mxu0 0.0
        %1764 = vmatpush1.msra.mxu0 0.0
        %1765 = vmatprep.subr.mxu0 0.0
        %1766 = vmatpush1.msra.mxu0 0.0
        %1767 = vmatprep.subr.mxu0 0.0
        %1768 = vmatpush1.msra.mxu0 0.0
        %1769 = vmatprep.subr.mxu0 0.0
        %1770 = vmatpush1.msra.mxu0 0.0
        %1771 = vmatprep.subr.mxu0 0.0
        %1772 = vmatpush1.msra.mxu0 0.0
        %1773 = vmatprep.subr.mxu0 0.0
        %1774 = vmatpush1.msra.mxu0 0.0
        %1775 = vmatprep.subr.mxu0 0.0
        %1776 = vmatpush1.msra.mxu0 0.0
        %1777 = vmatprep.subr.mxu0 0.0
        %1778 = vmatpush1.msra.mxu0 0.0
        %1779 = vmatprep.subr.mxu0 %v1733
        %1780 = vmatpush1.msra.mxu0 %v1732
        %1781 = vmatprep.subr.mxu0 %v1731
        %1782 = vmatpush1.msra.mxu0 %v1730
        %1783 = vmatprep.subr.mxu0 0.0
        %1784 = vmatpush2.msra.mxu0 0.0
        %1785 = vmatprep.subr.mxu0 0.0
        %1786 = vmatpush2.msra.mxu0 0.0
        %1787 = vmatprep.subr.mxu0 0.0
        %1788 = vmatpush2.msra.mxu0 0.0
        %1789 = vmatprep.subr.mxu0 0.0
        %1790 = vmatpush2.msra.mxu0 0.0
        %1791 = vmatprep.subr.mxu0 0.0
        %1792 = vmatpush2.msra.mxu0 0.0
        %1793 = vmatprep.subr.mxu0 0.0
        %1794 = vmatpush2.msra.mxu0 0.0
        %1795 = vmatprep.subr.mxu0 0.0
        %1796 = vmatpush2.msra.mxu0 0.0
        %1797 = vmatprep.subr.mxu0 0.0
        %1798 = vmatpush2.msra.mxu0 0.0
        %1799 = vmatprep.subr.mxu0 0.0
        %1800 = vmatpush2.msra.mxu0 0.0
        %1801 = vmatprep.subr.mxu0 0.0
        %1802 = vmatpush2.msra.mxu0 0.0
        %1803 = vmatprep.subr.mxu0 0.0
        %1804 = vmatpush2.msra.mxu0 0.0
        %1805 = vmatprep.subr.mxu0 0.0
        %1806 = vmatpush2.msra.mxu0 0.0
        %1807 = vmatprep.subr.mxu0 0.0
        %1808 = vmatpush2.msra.mxu0 0.0
        %1809 = vmatprep.subr.mxu0 0.0
        %1810 = vmatpush2.msra.mxu0 0.0
        %1811 = vmatprep.subr.mxu0 0.0
        %1812 = vmatpush2.msra.mxu0 0.0
        %1813 = vmatprep.subr.mxu0 0.0
        %1814 = vmatpush2.msra.mxu0 0.0
        %1815 = vmatprep.mubr.f32.mxu0 0.0
        %1816 = vmatmul.mubr.f32.gmra.mxu0 %v1749
        %v1817 = vpop.f32.mrf.mxu0
        %v1818 = vadd.f32 0.0, %v1817
        %v1819 = vpop.f32.mrf.mxu0
        %v1820 = vadd.f32 0.0, %v1819
        %1821 = vdwg.mxu0
        %v1822 = vmul.f32 %v1739, %v1818
        %v1823 = vmul.f32 %v1745, %v1820
        %v1824 = vrcp.pop %v1822
        %v1825 = vmul.f32 %v440, %v1824
        %v1826 = vrcp.pop %v1823
        %v1827 = vmul.f32 %v441, %v1826
        %v1828 = vld [vmem:[%s7] sm:$0xff]
        %v1829 = vld [vmem:[%s7 + $0x8] sm:$0xff]
        %vm1830 = vcmask 64512
        %v1832 = vsel %vm1830, %v1828, 0
        %v1835 = vsel %vm1830, %v1829, 0
        %1837 = vmatprep.subr.mxu0 0.0
        %1838 = vmatpush1.msra.mxu0 0.0
        %1839 = vmatprep.subr.mxu0 0.0
        %1840 = vmatpush1.msra.mxu0 0.0
        %1841 = vmatprep.subr.mxu0 0.0
        %1842 = vmatpush1.msra.mxu0 0.0
        %1843 = vmatprep.subr.mxu0 0.0
        %1844 = vmatpush1.msra.mxu0 0.0
        %1845 = vmatprep.subr.mxu0 0.0
        %1846 = vmatpush1.msra.mxu0 0.0
        %1847 = vmatprep.subr.mxu0 0.0
        %1848 = vmatpush1.msra.mxu0 0.0
        %1849 = vmatprep.subr.mxu0 0.0
        %1850 = vmatpush1.msra.mxu0 0.0
        %1851 = vmatprep.subr.mxu0 0.0
        %1852 = vmatpush1.msra.mxu0 0.0
        %1853 = vmatprep.subr.mxu0 0.0
        %1854 = vmatpush1.msra.mxu0 0.0
        %1855 = vmatprep.subr.mxu0 0.0
        %1856 = vmatpush1.msra.mxu0 0.0
        %1857 = vmatprep.subr.mxu0 0.0
        %1858 = vmatpush1.msra.mxu0 0.0
        %1859 = vmatprep.subr.mxu0 0.0
        %1860 = vmatpush1.msra.mxu0 0.0
        %1861 = vmatprep.subr.mxu0 0.0
        %1862 = vmatpush1.msra.mxu0 0.0
        %1863 = vmatprep.subr.mxu0 0.0
        %1864 = vmatpush1.msra.mxu0 0.0
        %1865 = vmatprep.subr.mxu0 0.0
        %1866 = vmatpush1.msra.mxu0 0.0
        %1867 = vmatprep.subr.mxu0 %v1827
        %1868 = vmatpush1.msra.mxu0 %v1825
        %1869 = vmatprep.subr.mxu0 0.0
        %1870 = vmatpush2.msra.mxu0 0.0
        %1871 = vmatprep.subr.mxu0 0.0
        %1872 = vmatpush2.msra.mxu0 0.0
        %1873 = vmatprep.subr.mxu0 0.0
        %1874 = vmatpush2.msra.mxu0 0.0
        %1875 = vmatprep.subr.mxu0 0.0
        %1876 = vmatpush2.msra.mxu0 0.0
        %1877 = vmatprep.subr.mxu0 0.0
        %1878 = vmatpush2.msra.mxu0 0.0
        %1879 = vmatprep.subr.mxu0 0.0
        %1880 = vmatpush2.msra.mxu0 0.0
        %1881 = vmatprep.subr.mxu0 0.0
        %1882 = vmatpush2.msra.mxu0 0.0
        %1883 = vmatprep.subr.mxu0 0.0
        %1884 = vmatpush2.msra.mxu0 0.0
        %1885 = vmatprep.subr.mxu0 0.0
        %1886 = vmatpush2.msra.mxu0 0.0
        %1887 = vmatprep.subr.mxu0 0.0
        %1888 = vmatpush2.msra.mxu0 0.0
        %1889 = vmatprep.subr.mxu0 0.0
        %1890 = vmatpush2.msra.mxu0 0.0
        %1891 = vmatprep.subr.mxu0 0.0
        %1892 = vmatpush2.msra.mxu0 0.0
        %1893 = vmatprep.subr.mxu0 0.0
        %1894 = vmatpush2.msra.mxu0 0.0
        %1895 = vmatprep.subr.mxu0 0.0
        %1896 = vmatpush2.msra.mxu0 0.0
        %1897 = vmatprep.subr.mxu0 0.0
        %1898 = vmatpush2.msra.mxu0 0.0
        %1899 = vmatprep.subr.mxu0 0.0
        %1900 = vmatpush2.msra.mxu0 0.0
        %1901 = vmatprep.mubr.f32.mxu0 0.0
        %1902 = vmatmul.mubr.f32.gmra.mxu0 %v1832
        %v1903 = vpop.f32.mrf.mxu0
        %v1904 = vadd.f32 0.0, %v1903
        %v1905 = vpop.f32.mrf.mxu0
        %v1906 = vadd.f32 0.0, %v1905
        %1907 = vmatprep.mubr.f32.mxu0 0.0
        %1908 = vmatmul.mubr.f32.gmra.mxu0 %v1835
        %v1909 = vpop.f32.mrf.mxu0
        %v1910 = vadd.f32 0.0, %v1909
        %v1911 = vpop.f32.mrf.mxu0
        %v1912 = vadd.f32 0.0, %v1911
        %1913 = vdwg.mxu0
        %v1914 = vmul.f32 %v1730, %v1904
        %v1915 = vmul.f32 %v1731, %v1906
        %v1916 = vmul.f32 %v1732, %v1910
        %v1917 = vmul.f32 %v1733, %v1912
        %v1918 = vld [vmem:[%s8] sm:$0xff]
        %v1919 = vld [vmem:[%s8 + $0x8] sm:$0xff]
        %v1921 = vsel %vm1747, %v1918, 0
        %v1924 = vsel %vm1747, %v1919, 0
        %1926 = vmatprep.subr.mxu0 0.0
        %1927 = vmatpush1.msra.mxu0 0.0
        %1928 = vmatprep.subr.mxu0 0.0
        %1929 = vmatpush1.msra.mxu0 0.0
        %1930 = vmatprep.subr.mxu0 0.0
        %1931 = vmatpush1.msra.mxu0 0.0
        %1932 = vmatprep.subr.mxu0 0.0
        %1933 = vmatpush1.msra.mxu0 0.0
        %1934 = vmatprep.subr.mxu0 0.0
        %1935 = vmatpush1.msra.mxu0 0.0
        %1936 = vmatprep.subr.mxu0 0.0
        %1937 = vmatpush1.msra.mxu0 0.0
        %1938 = vmatprep.subr.mxu0 0.0
        %1939 = vmatpush1.msra.mxu0 0.0
        %1940 = vmatprep.subr.mxu0 0.0
        %1941 = vmatpush1.msra.mxu0 0.0
        %1942 = vmatprep.subr.mxu0 0.0
        %1943 = vmatpush1.msra.mxu0 0.0
        %1944 = vmatprep.subr.mxu0 0.0
        %1945 = vmatpush1.msra.mxu0 0.0
        %1946 = vmatprep.subr.mxu0 0.0
        %1947 = vmatpush1.msra.mxu0 0.0
        %1948 = vmatprep.subr.mxu0 0.0
        %1949 = vmatpush1.msra.mxu0 0.0
        %1950 = vmatprep.subr.mxu0 0.0
        %1951 = vmatpush1.msra.mxu0 0.0
        %1952 = vmatprep.subr.mxu0 0.0
        %1953 = vmatpush1.msra.mxu0 0.0
        %1954 = vmatprep.subr.mxu0 %v1917
        %1955 = vmatpush1.msra.mxu0 %v1916
        %1956 = vmatprep.subr.mxu0 %v1915
        %1957 = vmatpush1.msra.mxu0 %v1914
        %1958 = vmatprep.subr.mxu0 0.0
        %1959 = vmatpush2.msra.mxu0 0.0
        %1960 = vmatprep.subr.mxu0 0.0
        %1961 = vmatpush2.msra.mxu0 0.0
        %1962 = vmatprep.subr.mxu0 0.0
        %1963 = vmatpush2.msra.mxu0 0.0
        %1964 = vmatprep.subr.mxu0 0.0
        %1965 = vmatpush2.msra.mxu0 0.0
        %1966 = vmatprep.subr.mxu0 0.0
        %1967 = vmatpush2.msra.mxu0 0.0
        %1968 = vmatprep.subr.mxu0 0.0
        %1969 = vmatpush2.msra.mxu0 0.0
        %1970 = vmatprep.subr.mxu0 0.0
        %1971 = vmatpush2.msra.mxu0 0.0
        %1972 = vmatprep.subr.mxu0 0.0
        %1973 = vmatpush2.msra.mxu0 0.0
        %1974 = vmatprep.subr.mxu0 0.0
        %1975 = vmatpush2.msra.mxu0 0.0
        %1976 = vmatprep.subr.mxu0 0.0
        %1977 = vmatpush2.msra.mxu0 0.0
        %1978 = vmatprep.subr.mxu0 0.0
        %1979 = vmatpush2.msra.mxu0 0.0
        %1980 = vmatprep.subr.mxu0 0.0
        %1981 = vmatpush2.msra.mxu0 0.0
        %1982 = vmatprep.subr.mxu0 0.0
        %1983 = vmatpush2.msra.mxu0 0.0
        %1984 = vmatprep.subr.mxu0 0.0
        %1985 = vmatpush2.msra.mxu0 0.0
        %1986 = vmatprep.subr.mxu0 0.0
        %1987 = vmatpush2.msra.mxu0 0.0
        %1988 = vmatprep.subr.mxu0 0.0
        %1989 = vmatpush2.msra.mxu0 0.0
        %1990 = vmatprep.mubr.f32.mxu0 0.0
        %1991 = vmatmul.mubr.f32.gmra.mxu0 %v1921
        %v1992 = vpop.f32.mrf.mxu0
        %v1993 = vadd.f32 0.001, %v1992
        %v1994 = vpop.f32.mrf.mxu0
        %v1995 = vadd.f32 0.001, %v1994
        %1996 = vmatprep.mubr.f32.mxu0 0.0
        %1997 = vmatmul.mubr.f32.gmra.mxu0 %v1924
        %v1998 = vpop.f32.mrf.mxu0
        %v1999 = vadd.f32 0.001, %v1998
        %v2000 = vpop.f32.mrf.mxu0
        %v2001 = vadd.f32 0.001, %v2000
        %2002 = vdwg.mxu0
        %2003 = vst [vmem:[%s409] sm:$0xff] %v1914
        %2004 = vst [vmem:[%s409 + $0x8] sm:$0xff] %v1915
        %2005 = vst [vmem:[%s409 + $0x10] sm:$0xff] %v1916
        %2006 = vst [vmem:[%s409 + $0x18] sm:$0xff] %v1917
        %2007 = vst [vmem:[%s416] sm:$0xff] %v1993
        %2008 = vst [vmem:[%s416 + $0x8] sm:$0xff] %v1995
        %2009 = vst [vmem:[%s416 + $0x10] sm:$0xff] %v1999
        %2010 = vst [vmem:[%s416 + $0x18] sm:$0xff] %v2001
        %s2011 = sand.u32 %s253, 1
        %s2012 = scalar_lea.sflag [#allocation3], %s2011
        %s2013 = sand.u32 %s253, 1
        %s2014 = smul.addr %s2013, 32
        %s2015 = scalar_lea.vmem [#allocation2], %s2014
        %s2016 = sand.u32 %s281, 1
        %s2017 = scalar_lea.sflag [#allocation5], %s2016
        %s2018 = sand.u32 %s281, 1
        %s2019 = smul.addr %s2018, 32
        %s2020 = scalar_lea.vmem [#allocation4], %s2019
        // Predicated region
        $region57: #{tpu_custom_call.1} parent=55 // pred_check
          %p2021 = pneg %p263
        $region58: #{tpu_custom_call.1} parent=55 // pred_check_branch
          %2023 = sbr.rel (%p2021) target = $region60
        $region59: #{tpu_custom_call.1} parent=55 // pred_region
          %s2024 = smul.u32 2, %s33
          %s2026 = ssub.s32 512, 512
          %2027 = vsyncadd %s2012, %s2026
          %s2028 = smul.addr %s32, 4
          %s2029 = sadd.s32 %s2024, %s2028
          %s2030 = smul.addr %s2029, 128
          %s2031 = scalar_lea.hbm %s9, %s2030
          %s2032 = sshll.u32 %s2015, 4
          %s2033 = int_to_ptr.vmem [resolvable:$true] %s2032
          %2038 = dma.vmem_to_hbm [thread:$0]  %s2033, 512, %s2031, %s2012, 256, 256, 16
        $region60: #{tpu_custom_call.1} parent=55 // pred_fallthru
          _
        // Predicated region
        $region61: #{tpu_custom_call.1} parent=55 // pred_check
          %p2039 = pneg %p291
        $region62: #{tpu_custom_call.1} parent=55 // pred_check_branch
          %2041 = sbr.rel (%p2039) target = $region64
        $region63: #{tpu_custom_call.1} parent=55 // pred_region
          %s2042 = smul.u32 2, %s33
          %s2044 = ssub.s32 512, 512
          %2045 = vsyncadd %s2017, %s2044
          %s2046 = smul.addr %s32, 4
          %s2047 = sadd.s32 %s2042, %s2046
          %s2048 = smul.addr %s2047, 128
          %s2049 = scalar_lea.hbm %s10, %s2048
          %s2050 = sshll.u32 %s2020, 4
          %s2051 = int_to_ptr.vmem [resolvable:$true] %s2050
          %2056 = dma.vmem_to_hbm [thread:$0]  %s2051, 512, %s2049, %s2017, 256, 256, 16
        $region64: #{tpu_custom_call.1} parent=55 // pred_fallthru
          _
      $region56: #{tpu_custom_call.1} parent=5 // pred_fallthru
        _
      %p2057 = scmp.le.s32.totalorder 2, %s23
      // Predicated region
      $region65: #{tpu_custom_call.1} parent=5 // pred_check
        %p2058 = pneg %p2057
      $region66: #{tpu_custom_call.1} parent=5 // pred_check_branch
        %2060 = sbr.rel (%p2058) target = $region68
      $region67: #{tpu_custom_call.1} parent=5 // pred_region
        %s2061 = ssub.s32 %s23, 2
        // Predicated region
        $region69: #{tpu_custom_call.1} parent=67 // pred_check
          %p2062 = pneg %p269
        $region70: #{tpu_custom_call.1} parent=67 // pred_check_branch
          %2064 = sbr.rel (%p2062) target = $region72
        $region71: #{tpu_custom_call.1} parent=67 // pred_region
          %s2065 = sand.u32 %s254, 1
          %s2066 = scalar_lea.sflag [#allocation3], %s2065
          %s2067 = sand.u32 %s254, 1
          %s2068 = smul.addr %s2067, 32
          %s2069 = scalar_lea.vmem [#allocation2], %s2068
          %2070 = dma.done %s2066, 512
        $region72: #{tpu_custom_call.1} parent=67 // pred_fallthru
          _
        // Predicated region
        $region73: #{tpu_custom_call.1} parent=67 // pred_check
          %p2071 = pneg %p297
        $region74: #{tpu_custom_call.1} parent=67 // pred_check_branch
          %2073 = sbr.rel (%p2071) target = $region76
        $region75: #{tpu_custom_call.1} parent=67 // pred_region
          %s2074 = sand.u32 %s282, 1
          %s2075 = scalar_lea.sflag [#allocation5], %s2074
          %s2076 = sand.u32 %s282, 1
          %s2077 = smul.addr %s2076, 32
          %s2078 = scalar_lea.vmem [#allocation4], %s2077
          %2079 = dma.done %s2075, 512
        $region76: #{tpu_custom_call.1} parent=67 // pred_fallthru
          _
      $region68: #{tpu_custom_call.1} parent=5 // pred_fallthru
        _
    $region6: #{tpu_custom_call.1} parent=1 // loop_footer
      %s27 = sadd.s32 1, %s23
    $region7: #{tpu_custom_call.1} parent=1 // loop_footer_branch
      %22 = sbr.rel target = $region3
    $region8: #{tpu_custom_call.1} parent=1 // loop_exit
      _
    %2080 = vsyncpa [#allocation3], 1
    %s2081 = scalar_lea.sflag [#allocation3], 1
    %2082 = vsyncpa %s2081, 1
    %2083 = vsyncpa [#allocation5], 1
    %s2084 = scalar_lea.sflag [#allocation5], 1
    %2085 = vsyncpa %s2084, 1

</llo_original>
